<compile_context>
chip_gen: v5e
topology: v5e:2x2
jax: 0.10.0
libtpu: 0.0.40
codegen_flags: <defaults>
</compile_context>

<pallas_src>
import math

import jax
import jax.numpy as jnp
import numpy as np
from jax.experimental import pallas as pl
from jax.experimental.pallas import tpu as pltpu

# ---- model hyperparameters (small, consistent with the module) -------------
N = 2                      # batch
S = 8                      # seq_len
E = 32                     # embed_size
HEADS = 4
HD = E // HEADS            # head_dim = 8
FWD_EXP = 4
H = FWD_EXP * E            # feed-forward hidden = 128
L_LAYERS = 2               # num_layers
VOCAB = 50
MAX_LEN = 16
R = N * S                  # flattened rows
LN_EPS = 1e-5
INV_SQRT_E = 1.0 / math.sqrt(float(E))   # torch scales by sqrt(embed_size)


# ---------------------------------------------------------------------------
# Fused kernel: one grid step == one TransformerBlock layer.
#   Step 0 additionally initializes the activation with word+pos embedding
#   (dropout == identity in eval).  The activation lives in o_ref, which is
#   VMEM-resident across the whole (sequential) layer axis.
# ---------------------------------------------------------------------------
def encoder_layer_kernel(we_ref, pe_ref, mask_ref,
                         wq_ref, wk_ref, wv_ref,
                         wfc_ref, bfc_ref, g1_ref, b1_ref,
                         w1_ref, bb1_ref, w2_ref, bb2_ref,
                         g2_ref, b2_ref, o_ref):
    @pl.when(pl.program_id(0) == 0)
    def _():
        # embedding sum; nn.Dropout in eval mode is the identity
        o_ref[...] = we_ref[...] + pe_ref[...]

    x = o_ref[...]                                           # (R, E)

    # per-head Q/K/V projections as one (R,E) @ (E,E) matmul each
    # (weights are pre-built block-diagonal kron(I_heads, W^T))
    qp = jnp.dot(x, wq_ref[0], preferred_element_type=jnp.float32)
    kp = jnp.dot(x, wk_ref[0], preferred_element_type=jnp.float32)
    vp = jnp.dot(x, wv_ref[0], preferred_element_type=jnp.float32)

    # per-(batch, head) attention, fully unrolled inside this single grid step
    batch_outs = []
    for b in range(N):
        rs = slice(b * S, (b + 1) * S)
        m_b = mask_ref[b]                                    # (S, S)
        head_outs = []
        for h in range(HEADS):
            cs = slice(h * HD, (h + 1) * HD)
            qh = qp[rs, cs]                                  # (S, HD)
            kh = kp[rs, cs]
            vh = vp[rs, cs]
            # energy[q, k] = sum_d qh[q, d] * kh[k, d]
            energy = jax.lax.dot_general(
                qh, kh, (((1,), (1,)), ((), ())),
                preferred_element_type=jnp.float32)          # (S, S)
            # masked_fill BEFORE scaling, exactly like the torch module
            energy = jnp.where(m_b == 0.0, jnp.float32(-1e20), energy)
            scaled = energy * INV_SQRT_E
            mx = jnp.max(scaled, axis=-1, keepdims=True)
            ex = jnp.exp(scaled - mx)
            attn = ex / jnp.sum(ex, axis=-1, keepdims=True)
            head_outs.append(
                jnp.dot(attn, vh, preferred_element_type=jnp.float32))
        batch_outs.append(jnp.concatenate(head_outs, axis=-1))   # (S, E)
    attn_out = jnp.concatenate(batch_outs, axis=0)               # (R, E)

    # fc_out + residual + LayerNorm1 (biased variance, like torch)
    ao = jnp.dot(attn_out, wfc_ref[0],
                 preferred_element_type=jnp.float32) + bfc_ref[0]
    x1 = ao + x
    mu = jnp.mean(x1, axis=-1, keepdims=True)
    var = jnp.mean((x1 - mu) * (x1 - mu), axis=-1, keepdims=True)
    x1 = (x1 - mu) * jax.lax.rsqrt(var + LN_EPS) * g1_ref[0] + b1_ref[0]

    # feed-forward: Linear -> ReLU -> Linear
    hdn = jnp.dot(x1, w1_ref[0],
                  preferred_element_type=jnp.float32) + bb1_ref[0]
    hdn = jnp.maximum(hdn, 0.0)
    ff = jnp.dot(hdn, w2_ref[0],
                 preferred_element_type=jnp.float32) + bb2_ref[0]

    # residual + LayerNorm2
    y = ff + x1
    mu2 = jnp.mean(y, axis=-1, keepdims=True)
    var2 = jnp.mean((y - mu2) * (y - mu2), axis=-1, keepdims=True)
    o_ref[...] = (y - mu2) * jax.lax.rsqrt(var2 + LN_EPS) * g2_ref[0] + b2_ref[0]


# ---------------------------------------------------------------------------
# One-time parameter preparation (hoisted out of the forward pass):
#   block-diagonal per-head projections, weight transposes, bias reshapes,
#   all stacked per layer on a leading L axis.
# ---------------------------------------------------------------------------
def prepare_params(layer_params):
    eye_h = jnp.eye(HEADS, dtype=jnp.float32)

    def stack(fn):
        return jnp.stack([fn(p) for p in layer_params])

    return {
        "wq": stack(lambda p: jnp.kron(eye_h, p["wq"].T)),    # (L, E, E)
        "wk": stack(lambda p: jnp.kron(eye_h, p["wk"].T)),
        "wv": stack(lambda p: jnp.kron(eye_h, p["wv"].T)),
        "wfc": stack(lambda p: p["wfc"].T),                   # (L, E, E)
        "bfc": stack(lambda p: p["bfc"].reshape(1, E)),       # (L, 1, E)
        "g1": stack(lambda p: p["g1"].reshape(1, E)),
        "b1": stack(lambda p: p["b1"].reshape(1, E)),
        "w1": stack(lambda p: p["w1"].T),                     # (L, E, H)
        "bb1": stack(lambda p: p["bb1"].reshape(1, H)),       # (L, 1, H)
        "w2": stack(lambda p: p["w2"].T),                     # (L, H, E)
        "bb2": stack(lambda p: p["bb2"].reshape(1, E)),
        "g2": stack(lambda p: p["g2"].reshape(1, E)),
        "b2": stack(lambda p: p["b2"].reshape(1, E)),
    }


# ---------------------------------------------------------------------------
# Encoder forward: embedding gathers (plain JAX) + single fused pallas_call.
# ---------------------------------------------------------------------------
def encoder_forward(tokens, mask, word_emb, pos_emb, prepped, num_layers):
    n, s = tokens.shape
    assert (n, s) == (N, S)

    we_rows = jnp.take(word_emb, tokens.reshape(-1), axis=0)         # (R, E)
    pos = jnp.arange(s, dtype=jnp.int32)
    pe_rows = jnp.take(pos_emb, jnp.tile(pos, n), axis=0)            # (R, E)
    mask3 = mask.reshape(n, s, s).astype(jnp.float32)                # (N, S, S)

    def _full(shape):
        nd = len(shape)
        return pl.BlockSpec(shape, lambda l, _nd=nd: (0,) * _nd)

    def _layer(d1, d2):
        return pl.BlockSpec((1, d1, d2), lambda l: (l, 0, 0))

    out = pl.pallas_call(
        encoder_layer_kernel,
        out_shape=jax.ShapeDtypeStruct((R, E), jnp.float32),
        grid=(num_layers,),
        in_specs=[
            _full((R, E)),          # word-embedding rows
            _full((R, E)),          # position-embedding rows
            _full((N, S, S)),       # mask
            _layer(E, E),           # wq block-diag (transposed)
            _layer(E, E),           # wk block-diag
            _layer(E, E),           # wv block-diag
            _layer(E, E),           # fc_out weight^T
            _layer(1, E),           # fc_out bias
            _layer(1, E),           # norm1 gamma
            _layer(1, E),           # norm1 beta
            _layer(E, H),           # ff linear1 weight^T
            _layer(1, H),           # ff linear1 bias
            _layer(H, E),           # ff linear2 weight^T
            _layer(1, E),           # ff linear2 bias
            _layer(1, E),           # norm2 gamma
            _layer(1, E),           # norm2 beta
        ],
        out_specs=pl.BlockSpec((R, E), lambda l: (0, 0)),
        compiler_params=pltpu.CompilerParams(
            dimension_semantics=("arbitrary",),       # layers are sequential
            vmem_limit_bytes=32 * 1024 * 1024),
    )(we_rows, pe_rows, mask3,
      prepped["wq"], prepped["wk"], prepped["wv"],
      prepped["wfc"], prepped["bfc"], prepped["g1"], prepped["b1"],
      prepped["w1"], prepped["bb1"], prepped["w2"], prepped["bb2"],
      prepped["g2"], prepped["b2"])

    return out.reshape(n, s, E)


# ---------------------------------------------------------------------------
# Pure-JAX reference (mirrors the PyTorch Encoder forward, eval mode)
# ---------------------------------------------------------------------------
def layernorm_ref(x, g, b):
    mu = jnp.mean(x, axis=-1, keepdims=True)
    var = jnp.mean((x - mu) ** 2, axis=-1, keepdims=True)
    return (x - mu) / jnp.sqrt(var + LN_EPS) * g + b


def block_ref(x, mask, p):
    n, s, e = x.shape
    hd = e // HEADS
    v = x.reshape(n, s, HEADS, hd) @ p["wv"].T
    k = x.reshape(n, s, HEADS, hd) @ p["wk"].T
    q = x.reshape(n, s, HEADS, hd) @ p["wq"].T
    energy = jnp.einsum("nqhd,nkhd->nhqk", q, k)
    energy = jnp.where(mask == 0, jnp.float32(-1e20), energy)
    attn = jax.nn.softmax(energy / (e ** 0.5), axis=3)
    out = jnp.einsum("nhql,nlhd->nqhd", attn, v).reshape(n, s, e)
    out = out @ p["wfc"].T + p["bfc"]
    h = layernorm_ref(out + x, p["g1"], p["b1"])
    ff = jnp.maximum(h @ p["w1"].T + p["bb1"], 0.0) @ p["w2"].T + p["bb2"]
    return layernorm_ref(ff + h, p["g2"], p["b2"])


def encoder_ref(tokens, mask, word_emb, pos_emb, layer_params):
    n, s = tokens.shape
    x = word_emb[tokens] + pos_emb[jnp.arange(s)][None, :, :]
    for p in layer_params:
        x = block_ref(x, mask, p)
    return x


# ---------------------------------------------------------------------------
def make_layer_params(key):
    ks = jax.random.split(key, 12)
    return {
        "wq": 0.1 * jax.random.normal(ks[0], (HD, HD), jnp.float32),
        "wk": 0.1 * jax.random.normal(ks[1], (HD, HD), jnp.float32),
        "wv": 0.1 * jax.random.normal(ks[2], (HD, HD), jnp.float32),
        "wfc": 0.1 * jax.random.normal(ks[3], (E, E), jnp.float32),
        "bfc": 0.1 * jax.random.normal(ks[4], (E,), jnp.float32),
        "g1": 1.0 + 0.05 * jax.random.normal(ks[5], (E,), jnp.float32),
        "b1": 0.05 * jax.random.normal(ks[6], (E,), jnp.float32),
        "w1": 0.1 * jax.random.normal(ks[7], (H, E), jnp.float32),
        "bb1": 0.1 * jax.random.normal(ks[8], (H,), jnp.float32),
        "w2": 0.1 * jax.random.normal(ks[9], (E, H), jnp.float32),
        "bb2": 0.1 * jax.random.normal(ks[10], (E,), jnp.float32),
        "g2": 1.0 + 0.05 * jax.random.normal(ks[11], (E,), jnp.float32),
        "b2": 0.05 * jax.random.normal(ks[11], (E,), jnp.float32),
    }


if __name__ == "__main__":
    root = jax.random.PRNGKey(0)
    k_tok, k_we, k_pe, k_layers = jax.random.split(root, 4)

    tokens = jax.random.randint(k_tok, (N, S), 0, VOCAB)
    word_emb = 0.1 * jax.random.normal(k_we, (VOCAB, E), jnp.float32)
    pos_emb = 0.1 * jax.random.normal(k_pe, (MAX_LEN, E), jnp.float32)
    # causal mask, broadcast over batch/heads (N, 1, S, S)
    mask = jnp.broadcast_to(jnp.tril(jnp.ones((S, S), jnp.float32)),
                            (N, 1, S, S))

    layer_keys = jax.random.split(k_layers, L_LAYERS)
    raw_layers = [make_layer_params(k) for k in layer_keys]
    prepped = prepare_params(raw_layers)            # one-time parameter prep

    out = encoder_forward(tokens, mask, word_emb, pos_emb, prepped, L_LAYERS)
    out = jax.block_until_ready(out)

    ref = jax.block_until_ready(
        encoder_ref(tokens, mask, word_emb, pos_emb, raw_layers))

    assert out.shape == (N, S, E)
    np.testing.assert_allclose(np.asarray(out), np.asarray(ref),
                               rtol=1e-4, atol=1e-4)
    print("KERNEL_OK")
</pallas_src>

<mosaic_0001>
module attributes {stable_mosaic.version = 11 : i64} {
  func.func @encoder_layer_kernel(%arg0: i32, %arg1: memref<16x32xf32, #tpu.memory_space<vmem>>, %arg2: memref<16x32xf32, #tpu.memory_space<vmem>>, %arg3: memref<2x8x8xf32, #tpu.memory_space<vmem>>, %arg4: memref<1x32x32xf32, #tpu.memory_space<vmem>>, %arg5: memref<1x32x32xf32, #tpu.memory_space<vmem>>, %arg6: memref<1x32x32xf32, #tpu.memory_space<vmem>>, %arg7: memref<1x32x32xf32, #tpu.memory_space<vmem>>, %arg8: memref<1x1x32xf32, #tpu.memory_space<vmem>>, %arg9: memref<1x1x32xf32, #tpu.memory_space<vmem>>, %arg10: memref<1x1x32xf32, #tpu.memory_space<vmem>>, %arg11: memref<1x32x128xf32, #tpu.memory_space<vmem>>, %arg12: memref<1x1x128xf32, #tpu.memory_space<vmem>>, %arg13: memref<1x128x32xf32, #tpu.memory_space<vmem>>, %arg14: memref<1x1x32xf32, #tpu.memory_space<vmem>>, %arg15: memref<1x1x32xf32, #tpu.memory_space<vmem>>, %arg16: memref<1x1x32xf32, #tpu.memory_space<vmem>>, %arg17: memref<16x32xf32, #tpu.memory_space<vmem>>) attributes {dimension_semantics = [#tpu.dimension_semantics<arbitrary>], iteration_bounds = array<i64: 2>, scalar_prefetch = 0 : i64, scratch_operands = 0 : i64, tpu.core_type = #tpu.core_type<tc>, window_params = [{pipeline_mode = #tpu.pipeline_mode<synchronous>, transform_indices = @transform_0, window_bounds = array<i64: 16, 32>}, {pipeline_mode = #tpu.pipeline_mode<synchronous>, transform_indices = @transform_1, window_bounds = array<i64: 16, 32>}, {pipeline_mode = #tpu.pipeline_mode<synchronous>, transform_indices = @transform_2, window_bounds = array<i64: 2, 8, 8>}, {transform_indices = @transform_3, window_bounds = array<i64: 1, 32, 32>}, {transform_indices = @transform_4, window_bounds = array<i64: 1, 32, 32>}, {transform_indices = @transform_5, window_bounds = array<i64: 1, 32, 32>}, {transform_indices = @transform_6, window_bounds = array<i64: 1, 32, 32>}, {transform_indices = @transform_7, window_bounds = array<i64: 1, 1, 32>}, {transform_indices = @transform_8, window_bounds = array<i64: 1, 1, 32>}, {transform_indices = @transform_9, window_bounds = array<i64: 1, 1, 32>}, {transform_indices = @transform_10, window_bounds = array<i64: 1, 32, 128>}, {transform_indices = @transform_11, window_bounds = array<i64: 1, 1, 128>}, {transform_indices = @transform_12, window_bounds = array<i64: 1, 128, 32>}, {transform_indices = @transform_13, window_bounds = array<i64: 1, 1, 32>}, {transform_indices = @transform_14, window_bounds = array<i64: 1, 1, 32>}, {transform_indices = @transform_15, window_bounds = array<i64: 1, 1, 32>}, {pipeline_mode = #tpu.pipeline_mode<synchronous>, transform_indices = @transform_16, window_bounds = array<i64: 16, 32>}]} {
    %c0_i32 = arith.constant 0 : i32
    %0 = arith.cmpi eq, %arg0, %c0_i32 : i32
    %1 = arith.extui %0 : i1 to i32
    %c0_i32_0 = arith.constant 0 : i32
    %2 = arith.cmpi ne, %1, %c0_i32_0 : i32
    scf.if %2 {
      %c0_120 = arith.constant 0 : index
      %c0_121 = arith.constant 0 : index
      %262 = vector.load %arg1[%c0_120, %c0_121] : memref<16x32xf32, #tpu.memory_space<vmem>>, vector<16x32xf32>
      %c0_122 = arith.constant 0 : index
      %c0_123 = arith.constant 0 : index
      %263 = vector.load %arg2[%c0_122, %c0_123] : memref<16x32xf32, #tpu.memory_space<vmem>>, vector<16x32xf32>
      %264 = arith.addf %262, %263 : vector<16x32xf32>
      %c0_124 = arith.constant 0 : index
      %c0_125 = arith.constant 0 : index
      %265 = vector.load %arg17[%c0_124, %c0_125] : memref<16x32xf32, #tpu.memory_space<vmem>>, vector<16x32xf32>
      tpu.vector_store %arg17[%c0_124, %c0_125], %264 {strides = array<i32>} : memref<16x32xf32, #tpu.memory_space<vmem>>, vector<16x32xf32>,
    } else {
    }
    %c0 = arith.constant 0 : index
    %c0_1 = arith.constant 0 : index
    %3 = vector.load %arg17[%c0, %c0_1] : memref<16x32xf32, #tpu.memory_space<vmem>>, vector<16x32xf32>
    %c0_2 = arith.constant 0 : index
    %c0_3 = arith.constant 0 : index
    %c0_4 = arith.constant 0 : index
    %4 = vector.load %arg4[%c0_2, %c0_3, %c0_4] : memref<1x32x32xf32, #tpu.memory_space<vmem>>, vector<1x32x32xf32>
    %5 = vector.shape_cast %4 : vector<1x32x32xf32> to vector<32x32xf32>
    %cst = arith.constant dense<0.000000e+00> : vector<16x32xf32>
    %6 = tpu.matmul %3, %5, %cst {dimension_numbers = #tpu.dot_dimension_numbers<[1], [0], [0], [1], [0, 0, 1, 1], [], []>} : vector<16x32xf32>, vector<32x32xf32>, vector<16x32xf32> -> vector<16x32xf32>
    %c0_5 = arith.constant 0 : index
    %c0_6 = arith.constant 0 : index
    %c0_7 = arith.constant 0 : index
    %7 = vector.load %arg5[%c0_5, %c0_6, %c0_7] : memref<1x32x32xf32, #tpu.memory_space<vmem>>, vector<1x32x32xf32>
    %8 = vector.shape_cast %7 : vector<1x32x32xf32> to vector<32x32xf32>
    %cst_8 = arith.constant dense<0.000000e+00> : vector<16x32xf32>
    %9 = tpu.matmul %3, %8, %cst_8 {dimension_numbers = #tpu.dot_dimension_numbers<[1], [0], [0], [1], [0, 0, 1, 1], [], []>} : vector<16x32xf32>, vector<32x32xf32>, vector<16x32xf32> -> vector<16x32xf32>
    %c0_9 = arith.constant 0 : index
    %c0_10 = arith.constant 0 : index
    %c0_11 = arith.constant 0 : index
    %10 = vector.load %arg6[%c0_9, %c0_10, %c0_11] : memref<1x32x32xf32, #tpu.memory_space<vmem>>, vector<1x32x32xf32>
    %11 = vector.shape_cast %10 : vector<1x32x32xf32> to vector<32x32xf32>
    %cst_12 = arith.constant dense<0.000000e+00> : vector<16x32xf32>
    %12 = tpu.matmul %3, %11, %cst_12 {dimension_numbers = #tpu.dot_dimension_numbers<[1], [0], [0], [1], [0, 0, 1, 1], [], []>} : vector<16x32xf32>, vector<32x32xf32>, vector<16x32xf32> -> vector<16x32xf32>
    %c0_13 = arith.constant 0 : index
    %c0_14 = arith.constant 0 : index
    %c0_15 = arith.constant 0 : index
    %13 = vector.load %arg3[%c0_13, %c0_14, %c0_15] : memref<2x8x8xf32, #tpu.memory_space<vmem>>, vector<1x8x8xf32>
    %14 = vector.shape_cast %13 : vector<1x8x8xf32> to vector<8x8xf32>
    %15 = vector.extract_strided_slice %6 {offsets = [0, 0], sizes = [8, 8], strides = [1, 1]} : vector<16x32xf32> to vector<8x8xf32>
    %16 = vector.extract_strided_slice %9 {offsets = [0, 0], sizes = [8, 8], strides = [1, 1]} : vector<16x32xf32> to vector<8x8xf32>
    %17 = vector.extract_strided_slice %12 {offsets = [0, 0], sizes = [8, 8], strides = [1, 1]} : vector<16x32xf32> to vector<8x8xf32>
    %cst_16 = arith.constant dense<0.000000e+00> : vector<8x8xf32>
    %18 = tpu.matmul %15, %16, %cst_16 {dimension_numbers = #tpu.dot_dimension_numbers<[1], [1], [0], [0], [0, 0, 1, 0], [], []>} : vector<8x8xf32>, vector<8x8xf32>, vector<8x8xf32> -> vector<8x8xf32>
    %cst_17 = arith.constant 0.000000e+00 : f32
    %19 = vector.broadcast %cst_17 : f32 to vector<8x8xf32>
    %20 = arith.cmpf oeq, %14, %19 : vector<8x8xf32>
    %cst_18 = arith.constant -1.000000e+20 : f32
    %21 = vector.broadcast %cst_18 : f32 to vector<8x8xf32>
    %22 = arith.select %20, %21, %18 : vector<8x8xi1>, vector<8x8xf32>
    %cst_19 = arith.constant 0.176776692 : f32
    %23 = vector.broadcast %cst_19 : f32 to vector<8x8xf32>
    %24 = arith.mulf %22, %23 : vector<8x8xf32>
    %cst_20 = arith.constant dense<0xFF800000> : vector<8xf32>
    %25 = vector.multi_reduction <maximumf>, %24, %cst_20 [1] : vector<8x8xf32> to vector<8xf32>
    %26 = vector.shape_cast %25 : vector<8xf32> to vector<8x1xf32>
    %27 = vector.broadcast %26 : vector<8x1xf32> to vector<8x8xf32>
    %28 = arith.subf %24, %27 : vector<8x8xf32>
    %29 = math.exp %28 : vector<8x8xf32>
    %cst_21 = arith.constant dense<0.000000e+00> : vector<8xf32>
    %30 = vector.multi_reduction <add>, %29, %cst_21 [1] : vector<8x8xf32> to vector<8xf32>
    %31 = vector.shape_cast %30 : vector<8xf32> to vector<8x1xf32>
    %32 = vector.broadcast %31 : vector<8x1xf32> to vector<8x8xf32>
    %33 = arith.divf %29, %32 : vector<8x8xf32>
    %cst_22 = arith.constant dense<0.000000e+00> : vector<8x8xf32>
    %34 = tpu.matmul %33, %17, %cst_22 {dimension_numbers = #tpu.dot_dimension_numbers<[1], [0], [0], [1], [0, 0, 1, 1], [], []>} : vector<8x8xf32>, vector<8x8xf32>, vector<8x8xf32> -> vector<8x8xf32>
    %35 = vector.extract_strided_slice %6 {offsets = [0, 8], sizes = [8, 8], strides = [1, 1]} : vector<16x32xf32> to vector<8x8xf32>
    %36 = vector.extract_strided_slice %9 {offsets = [0, 8], sizes = [8, 8], strides = [1, 1]} : vector<16x32xf32> to vector<8x8xf32>
    %37 = vector.extract_strided_slice %12 {offsets = [0, 8], sizes = [8, 8], strides = [1, 1]} : vector<16x32xf32> to vector<8x8xf32>
    %cst_23 = arith.constant dense<0.000000e+00> : vector<8x8xf32>
    %38 = tpu.matmul %35, %36, %cst_23 {dimension_numbers = #tpu.dot_dimension_numbers<[1], [1], [0], [0], [0, 0, 1, 0], [], []>} : vector<8x8xf32>, vector<8x8xf32>, vector<8x8xf32> -> vector<8x8xf32>
    %cst_24 = arith.constant 0.000000e+00 : f32
    %39 = vector.broadcast %cst_24 : f32 to vector<8x8xf32>
    %40 = arith.cmpf oeq, %14, %39 : vector<8x8xf32>
    %cst_25 = arith.constant -1.000000e+20 : f32
    %41 = vector.broadcast %cst_25 : f32 to vector<8x8xf32>
    %42 = arith.select %40, %41, %38 : vector<8x8xi1>, vector<8x8xf32>
    %cst_26 = arith.constant 0.176776692 : f32
    %43 = vector.broadcast %cst_26 : f32 to vector<8x8xf32>
    %44 = arith.mulf %42, %43 : vector<8x8xf32>
    %cst_27 = arith.constant dense<0xFF800000> : vector<8xf32>
    %45 = vector.multi_reduction <maximumf>, %44, %cst_27 [1] : vector<8x8xf32> to vector<8xf32>
    %46 = vector.shape_cast %45 : vector<8xf32> to vector<8x1xf32>
    %47 = vector.broadcast %46 : vector<8x1xf32> to vector<8x8xf32>
    %48 = arith.subf %44, %47 : vector<8x8xf32>
    %49 = math.exp %48 : vector<8x8xf32>
    %cst_28 = arith.constant dense<0.000000e+00> : vector<8xf32>
    %50 = vector.multi_reduction <add>, %49, %cst_28 [1] : vector<8x8xf32> to vector<8xf32>
    %51 = vector.shape_cast %50 : vector<8xf32> to vector<8x1xf32>
    %52 = vector.broadcast %51 : vector<8x1xf32> to vector<8x8xf32>
    %53 = arith.divf %49, %52 : vector<8x8xf32>
    %cst_29 = arith.constant dense<0.000000e+00> : vector<8x8xf32>
    %54 = tpu.matmul %53, %37, %cst_29 {dimension_numbers = #tpu.dot_dimension_numbers<[1], [0], [0], [1], [0, 0, 1, 1], [], []>} : vector<8x8xf32>, vector<8x8xf32>, vector<8x8xf32> -> vector<8x8xf32>
    %55 = vector.extract_strided_slice %6 {offsets = [0, 16], sizes = [8, 8], strides = [1, 1]} : vector<16x32xf32> to vector<8x8xf32>
    %56 = vector.extract_strided_slice %9 {offsets = [0, 16], sizes = [8, 8], strides = [1, 1]} : vector<16x32xf32> to vector<8x8xf32>
    %57 = vector.extract_strided_slice %12 {offsets = [0, 16], sizes = [8, 8], strides = [1, 1]} : vector<16x32xf32> to vector<8x8xf32>
    %cst_30 = arith.constant dense<0.000000e+00> : vector<8x8xf32>
    %58 = tpu.matmul %55, %56, %cst_30 {dimension_numbers = #tpu.dot_dimension_numbers<[1], [1], [0], [0], [0, 0, 1, 0], [], []>} : vector<8x8xf32>, vector<8x8xf32>, vector<8x8xf32> -> vector<8x8xf32>
    %cst_31 = arith.constant 0.000000e+00 : f32
    %59 = vector.broadcast %cst_31 : f32 to vector<8x8xf32>
    %60 = arith.cmpf oeq, %14, %59 : vector<8x8xf32>
    %cst_32 = arith.constant -1.000000e+20 : f32
    %61 = vector.broadcast %cst_32 : f32 to vector<8x8xf32>
    %62 = arith.select %60, %61, %58 : vector<8x8xi1>, vector<8x8xf32>
    %cst_33 = arith.constant 0.176776692 : f32
    %63 = vector.broadcast %cst_33 : f32 to vector<8x8xf32>
    %64 = arith.mulf %62, %63 : vector<8x8xf32>
    %cst_34 = arith.constant dense<0xFF800000> : vector<8xf32>
    %65 = vector.multi_reduction <maximumf>, %64, %cst_34 [1] : vector<8x8xf32> to vector<8xf32>
    %66 = vector.shape_cast %65 : vector<8xf32> to vector<8x1xf32>
    %67 = vector.broadcast %66 : vector<8x1xf32> to vector<8x8xf32>
    %68 = arith.subf %64, %67 : vector<8x8xf32>
    %69 = math.exp %68 : vector<8x8xf32>
    %cst_35 = arith.constant dense<0.000000e+00> : vector<8xf32>
    %70 = vector.multi_reduction <add>, %69, %cst_35 [1] : vector<8x8xf32> to vector<8xf32>
    %71 = vector.shape_cast %70 : vector<8xf32> to vector<8x1xf32>
    %72 = vector.broadcast %71 : vector<8x1xf32> to vector<8x8xf32>
    %73 = arith.divf %69, %72 : vector<8x8xf32>
    %cst_36 = arith.constant dense<0.000000e+00> : vector<8x8xf32>
    %74 = tpu.matmul %73, %57, %cst_36 {dimension_numbers = #tpu.dot_dimension_numbers<[1], [0], [0], [1], [0, 0, 1, 1], [], []>} : vector<8x8xf32>, vector<8x8xf32>, vector<8x8xf32> -> vector<8x8xf32>
    %75 = vector.extract_strided_slice %6 {offsets = [0, 24], sizes = [8, 8], strides = [1, 1]} : vector<16x32xf32> to vector<8x8xf32>
    %76 = vector.extract_strided_slice %9 {offsets = [0, 24], sizes = [8, 8], strides = [1, 1]} : vector<16x32xf32> to vector<8x8xf32>
    %77 = vector.extract_strided_slice %12 {offsets = [0, 24], sizes = [8, 8], strides = [1, 1]} : vector<16x32xf32> to vector<8x8xf32>
    %cst_37 = arith.constant dense<0.000000e+00> : vector<8x8xf32>
    %78 = tpu.matmul %75, %76, %cst_37 {dimension_numbers = #tpu.dot_dimension_numbers<[1], [1], [0], [0], [0, 0, 1, 0], [], []>} : vector<8x8xf32>, vector<8x8xf32>, vector<8x8xf32> -> vector<8x8xf32>
    %cst_38 = arith.constant 0.000000e+00 : f32
    %79 = vector.broadcast %cst_38 : f32 to vector<8x8xf32>
    %80 = arith.cmpf oeq, %14, %79 : vector<8x8xf32>
    %cst_39 = arith.constant -1.000000e+20 : f32
    %81 = vector.broadcast %cst_39 : f32 to vector<8x8xf32>
    %82 = arith.select %80, %81, %78 : vector<8x8xi1>, vector<8x8xf32>
    %cst_40 = arith.constant 0.176776692 : f32
    %83 = vector.broadcast %cst_40 : f32 to vector<8x8xf32>
    %84 = arith.mulf %82, %83 : vector<8x8xf32>
    %cst_41 = arith.constant dense<0xFF800000> : vector<8xf32>
    %85 = vector.multi_reduction <maximumf>, %84, %cst_41 [1] : vector<8x8xf32> to vector<8xf32>
    %86 = vector.shape_cast %85 : vector<8xf32> to vector<8x1xf32>
    %87 = vector.broadcast %86 : vector<8x1xf32> to vector<8x8xf32>
    %88 = arith.subf %84, %87 : vector<8x8xf32>
    %89 = math.exp %88 : vector<8x8xf32>
    %cst_42 = arith.constant dense<0.000000e+00> : vector<8xf32>
    %90 = vector.multi_reduction <add>, %89, %cst_42 [1] : vector<8x8xf32> to vector<8xf32>
    %91 = vector.shape_cast %90 : vector<8xf32> to vector<8x1xf32>
    %92 = vector.broadcast %91 : vector<8x1xf32> to vector<8x8xf32>
    %93 = arith.divf %89, %92 : vector<8x8xf32>
    %cst_43 = arith.constant dense<0.000000e+00> : vector<8x8xf32>
    %94 = tpu.matmul %93, %77, %cst_43 {dimension_numbers = #tpu.dot_dimension_numbers<[1], [0], [0], [1], [0, 0, 1, 1], [], []>} : vector<8x8xf32>, vector<8x8xf32>, vector<8x8xf32> -> vector<8x8xf32>
    %95 = tpu.concatenate %34, %54, %74, %94 in 1 : vector<8x8xf32>, vector<8x8xf32>, vector<8x8xf32>, vector<8x8xf32> -> vector<8x32xf32>
    %c1 = arith.constant 1 : index
    %c0_44 = arith.constant 0 : index
    %c0_45 = arith.constant 0 : index
    %96 = vector.load %arg3[%c1, %c0_44, %c0_45] : memref<2x8x8xf32, #tpu.memory_space<vmem>>, vector<1x8x8xf32>
    %97 = vector.shape_cast %96 : vector<1x8x8xf32> to vector<8x8xf32>
    %98 = vector.extract_strided_slice %6 {offsets = [8, 0], sizes = [8, 8], strides = [1, 1]} : vector<16x32xf32> to vector<8x8xf32>
    %99 = vector.extract_strided_slice %9 {offsets = [8, 0], sizes = [8, 8], strides = [1, 1]} : vector<16x32xf32> to vector<8x8xf32>
    %100 = vector.extract_strided_slice %12 {offsets = [8, 0], sizes = [8, 8], strides = [1, 1]} : vector<16x32xf32> to vector<8x8xf32>
    %cst_46 = arith.constant dense<0.000000e+00> : vector<8x8xf32>
    %101 = tpu.matmul %98, %99, %cst_46 {dimension_numbers = #tpu.dot_dimension_numbers<[1], [1], [0], [0], [0, 0, 1, 0], [], []>} : vector<8x8xf32>, vector<8x8xf32>, vector<8x8xf32> -> vector<8x8xf32>
    %cst_47 = arith.constant 0.000000e+00 : f32
    %102 = vector.broadcast %cst_47 : f32 to vector<8x8xf32>
    %103 = arith.cmpf oeq, %97, %102 : vector<8x8xf32>
    %cst_48 = arith.constant -1.000000e+20 : f32
    %104 = vector.broadcast %cst_48 : f32 to vector<8x8xf32>
    %105 = arith.select %103, %104, %101 : vector<8x8xi1>, vector<8x8xf32>
    %cst_49 = arith.constant 0.176776692 : f32
    %106 = vector.broadcast %cst_49 : f32 to vector<8x8xf32>
    %107 = arith.mulf %105, %106 : vector<8x8xf32>
    %cst_50 = arith.constant dense<0xFF800000> : vector<8xf32>
    %108 = vector.multi_reduction <maximumf>, %107, %cst_50 [1] : vector<8x8xf32> to vector<8xf32>
    %109 = vector.shape_cast %108 : vector<8xf32> to vector<8x1xf32>
    %110 = vector.broadcast %109 : vector<8x1xf32> to vector<8x8xf32>
    %111 = arith.subf %107, %110 : vector<8x8xf32>
    %112 = math.exp %111 : vector<8x8xf32>
    %cst_51 = arith.constant dense<0.000000e+00> : vector<8xf32>
    %113 = vector.multi_reduction <add>, %112, %cst_51 [1] : vector<8x8xf32> to vector<8xf32>
    %114 = vector.shape_cast %113 : vector<8xf32> to vector<8x1xf32>
    %115 = vector.broadcast %114 : vector<8x1xf32> to vector<8x8xf32>
    %116 = arith.divf %112, %115 : vector<8x8xf32>
    %cst_52 = arith.constant dense<0.000000e+00> : vector<8x8xf32>
    %117 = tpu.matmul %116, %100, %cst_52 {dimension_numbers = #tpu.dot_dimension_numbers<[1], [0], [0], [1], [0, 0, 1, 1], [], []>} : vector<8x8xf32>, vector<8x8xf32>, vector<8x8xf32> -> vector<8x8xf32>
    %118 = vector.extract_strided_slice %6 {offsets = [8, 8], sizes = [8, 8], strides = [1, 1]} : vector<16x32xf32> to vector<8x8xf32>
    %119 = vector.extract_strided_slice %9 {offsets = [8, 8], sizes = [8, 8], strides = [1, 1]} : vector<16x32xf32> to vector<8x8xf32>
    %120 = vector.extract_strided_slice %12 {offsets = [8, 8], sizes = [8, 8], strides = [1, 1]} : vector<16x32xf32> to vector<8x8xf32>
    %cst_53 = arith.constant dense<0.000000e+00> : vector<8x8xf32>
    %121 = tpu.matmul %118, %119, %cst_53 {dimension_numbers = #tpu.dot_dimension_numbers<[1], [1], [0], [0], [0, 0, 1, 0], [], []>} : vector<8x8xf32>, vector<8x8xf32>, vector<8x8xf32> -> vector<8x8xf32>
    %cst_54 = arith.constant 0.000000e+00 : f32
    %122 = vector.broadcast %cst_54 : f32 to vector<8x8xf32>
    %123 = arith.cmpf oeq, %97, %122 : vector<8x8xf32>
    %cst_55 = arith.constant -1.000000e+20 : f32
    %124 = vector.broadcast %cst_55 : f32 to vector<8x8xf32>
    %125 = arith.select %123, %124, %121 : vector<8x8xi1>, vector<8x8xf32>
    %cst_56 = arith.constant 0.176776692 : f32
    %126 = vector.broadcast %cst_56 : f32 to vector<8x8xf32>
    %127 = arith.mulf %125, %126 : vector<8x8xf32>
    %cst_57 = arith.constant dense<0xFF800000> : vector<8xf32>
    %128 = vector.multi_reduction <maximumf>, %127, %cst_57 [1] : vector<8x8xf32> to vector<8xf32>
    %129 = vector.shape_cast %128 : vector<8xf32> to vector<8x1xf32>
    %130 = vector.broadcast %129 : vector<8x1xf32> to vector<8x8xf32>
    %131 = arith.subf %127, %130 : vector<8x8xf32>
    %132 = math.exp %131 : vector<8x8xf32>
    %cst_58 = arith.constant dense<0.000000e+00> : vector<8xf32>
    %133 = vector.multi_reduction <add>, %132, %cst_58 [1] : vector<8x8xf32> to vector<8xf32>
    %134 = vector.shape_cast %133 : vector<8xf32> to vector<8x1xf32>
    %135 = vector.broadcast %134 : vector<8x1xf32> to vector<8x8xf32>
    %136 = arith.divf %132, %135 : vector<8x8xf32>
    %cst_59 = arith.constant dense<0.000000e+00> : vector<8x8xf32>
    %137 = tpu.matmul %136, %120, %cst_59 {dimension_numbers = #tpu.dot_dimension_numbers<[1], [0], [0], [1], [0, 0, 1, 1], [], []>} : vector<8x8xf32>, vector<8x8xf32>, vector<8x8xf32> -> vector<8x8xf32>
    %138 = vector.extract_strided_slice %6 {offsets = [8, 16], sizes = [8, 8], strides = [1, 1]} : vector<16x32xf32> to vector<8x8xf32>
    %139 = vector.extract_strided_slice %9 {offsets = [8, 16], sizes = [8, 8], strides = [1, 1]} : vector<16x32xf32> to vector<8x8xf32>
    %140 = vector.extract_strided_slice %12 {offsets = [8, 16], sizes = [8, 8], strides = [1, 1]} : vector<16x32xf32> to vector<8x8xf32>
    %cst_60 = arith.constant dense<0.000000e+00> : vector<8x8xf32>
    %141 = tpu.matmul %138, %139, %cst_60 {dimension_numbers = #tpu.dot_dimension_numbers<[1], [1], [0], [0], [0, 0, 1, 0], [], []>} : vector<8x8xf32>, vector<8x8xf32>, vector<8x8xf32> -> vector<8x8xf32>
    %cst_61 = arith.constant 0.000000e+00 : f32
    %142 = vector.broadcast %cst_61 : f32 to vector<8x8xf32>
    %143 = arith.cmpf oeq, %97, %142 : vector<8x8xf32>
    %cst_62 = arith.constant -1.000000e+20 : f32
    %144 = vector.broadcast %cst_62 : f32 to vector<8x8xf32>
    %145 = arith.select %143, %144, %141 : vector<8x8xi1>, vector<8x8xf32>
    %cst_63 = arith.constant 0.176776692 : f32
    %146 = vector.broadcast %cst_63 : f32 to vector<8x8xf32>
    %147 = arith.mulf %145, %146 : vector<8x8xf32>
    %cst_64 = arith.constant dense<0xFF800000> : vector<8xf32>
    %148 = vector.multi_reduction <maximumf>, %147, %cst_64 [1] : vector<8x8xf32> to vector<8xf32>
    %149 = vector.shape_cast %148 : vector<8xf32> to vector<8x1xf32>
    %150 = vector.broadcast %149 : vector<8x1xf32> to vector<8x8xf32>
    %151 = arith.subf %147, %150 : vector<8x8xf32>
    %152 = math.exp %151 : vector<8x8xf32>
    %cst_65 = arith.constant dense<0.000000e+00> : vector<8xf32>
    %153 = vector.multi_reduction <add>, %152, %cst_65 [1] : vector<8x8xf32> to vector<8xf32>
    %154 = vector.shape_cast %153 : vector<8xf32> to vector<8x1xf32>
    %155 = vector.broadcast %154 : vector<8x1xf32> to vector<8x8xf32>
    %156 = arith.divf %152, %155 : vector<8x8xf32>
    %cst_66 = arith.constant dense<0.000000e+00> : vector<8x8xf32>
    %157 = tpu.matmul %156, %140, %cst_66 {dimension_numbers = #tpu.dot_dimension_numbers<[1], [0], [0], [1], [0, 0, 1, 1], [], []>} : vector<8x8xf32>, vector<8x8xf32>, vector<8x8xf32> -> vector<8x8xf32>
    %158 = vector.extract_strided_slice %6 {offsets = [8, 24], sizes = [8, 8], strides = [1, 1]} : vector<16x32xf32> to vector<8x8xf32>
    %159 = vector.extract_strided_slice %9 {offsets = [8, 24], sizes = [8, 8], strides = [1, 1]} : vector<16x32xf32> to vector<8x8xf32>
    %160 = vector.extract_strided_slice %12 {offsets = [8, 24], sizes = [8, 8], strides = [1, 1]} : vector<16x32xf32> to vector<8x8xf32>
    %cst_67 = arith.constant dense<0.000000e+00> : vector<8x8xf32>
    %161 = tpu.matmul %158, %159, %cst_67 {dimension_numbers = #tpu.dot_dimension_numbers<[1], [1], [0], [0], [0, 0, 1, 0], [], []>} : vector<8x8xf32>, vector<8x8xf32>, vector<8x8xf32> -> vector<8x8xf32>
    %cst_68 = arith.constant 0.000000e+00 : f32
    %162 = vector.broadcast %cst_68 : f32 to vector<8x8xf32>
    %163 = arith.cmpf oeq, %97, %162 : vector<8x8xf32>
    %cst_69 = arith.constant -1.000000e+20 : f32
    %164 = vector.broadcast %cst_69 : f32 to vector<8x8xf32>
    %165 = arith.select %163, %164, %161 : vector<8x8xi1>, vector<8x8xf32>
    %cst_70 = arith.constant 0.176776692 : f32
    %166 = vector.broadcast %cst_70 : f32 to vector<8x8xf32>
    %167 = arith.mulf %165, %166 : vector<8x8xf32>
    %cst_71 = arith.constant dense<0xFF800000> : vector<8xf32>
    %168 = vector.multi_reduction <maximumf>, %167, %cst_71 [1] : vector<8x8xf32> to vector<8xf32>
    %169 = vector.shape_cast %168 : vector<8xf32> to vector<8x1xf32>
    %170 = vector.broadcast %169 : vector<8x1xf32> to vector<8x8xf32>
    %171 = arith.subf %167, %170 : vector<8x8xf32>
    %172 = math.exp %171 : vector<8x8xf32>
    %cst_72 = arith.constant dense<0.000000e+00> : vector<8xf32>
    %173 = vector.multi_reduction <add>, %172, %cst_72 [1] : vector<8x8xf32> to vector<8xf32>
    %174 = vector.shape_cast %173 : vector<8xf32> to vector<8x1xf32>
    %175 = vector.broadcast %174 : vector<8x1xf32> to vector<8x8xf32>
    %176 = arith.divf %172, %175 : vector<8x8xf32>
    %cst_73 = arith.constant dense<0.000000e+00> : vector<8x8xf32>
    %177 = tpu.matmul %176, %160, %cst_73 {dimension_numbers = #tpu.dot_dimension_numbers<[1], [0], [0], [1], [0, 0, 1, 1], [], []>} : vector<8x8xf32>, vector<8x8xf32>, vector<8x8xf32> -> vector<8x8xf32>
    %178 = tpu.concatenate %117, %137, %157, %177 in 1 : vector<8x8xf32>, vector<8x8xf32>, vector<8x8xf32>, vector<8x8xf32> -> vector<8x32xf32>
    %179 = tpu.concatenate %95, %178 in 0 : vector<8x32xf32>, vector<8x32xf32> -> vector<16x32xf32>
    %c0_74 = arith.constant 0 : index
    %c0_75 = arith.constant 0 : index
    %c0_76 = arith.constant 0 : index
    %180 = vector.load %arg7[%c0_74, %c0_75, %c0_76] : memref<1x32x32xf32, #tpu.memory_space<vmem>>, vector<1x32x32xf32>
    %181 = vector.shape_cast %180 : vector<1x32x32xf32> to vector<32x32xf32>
    %cst_77 = arith.constant dense<0.000000e+00> : vector<16x32xf32>
    %182 = tpu.matmul %179, %181, %cst_77 {dimension_numbers = #tpu.dot_dimension_numbers<[1], [0], [0], [1], [0, 0, 1, 1], [], []>} : vector<16x32xf32>, vector<32x32xf32>, vector<16x32xf32> -> vector<16x32xf32>
    %c0_78 = arith.constant 0 : index
    %c0_79 = arith.constant 0 : index
    %c0_80 = arith.constant 0 : index
    %183 = vector.load %arg8[%c0_78, %c0_79, %c0_80] : memref<1x1x32xf32, #tpu.memory_space<vmem>>, vector<1x1x32xf32>
    %184 = vector.shape_cast %183 : vector<1x1x32xf32> to vector<1x32xf32>
    %185 = vector.broadcast %184 : vector<1x32xf32> to vector<16x32xf32>
    %186 = arith.addf %182, %185 : vector<16x32xf32>
    %187 = arith.addf %186, %3 : vector<16x32xf32>
    %cst_81 = arith.constant dense<0.000000e+00> : vector<16xf32>
    %188 = vector.multi_reduction <add>, %187, %cst_81 [1] : vector<16x32xf32> to vector<16xf32>
    %189 = vector.shape_cast %188 : vector<16xf32> to vector<16x1xf32>
    %cst_82 = arith.constant 3.200000e+01 : f32
    %190 = vector.broadcast %cst_82 : f32 to vector<16x1xf32>
    %191 = arith.divf %189, %190 : vector<16x1xf32>
    %192 = vector.broadcast %191 : vector<16x1xf32> to vector<16x32xf32>
    %193 = arith.subf %187, %192 : vector<16x32xf32>
    %194 = vector.broadcast %191 : vector<16x1xf32> to vector<16x32xf32>
    %195 = arith.subf %187, %194 : vector<16x32xf32>
    %196 = arith.mulf %193, %195 : vector<16x32xf32>
    %cst_83 = arith.constant dense<0.000000e+00> : vector<16xf32>
    %197 = vector.multi_reduction <add>, %196, %cst_83 [1] : vector<16x32xf32> to vector<16xf32>
    %198 = vector.shape_cast %197 : vector<16xf32> to vector<16x1xf32>
    %cst_84 = arith.constant 3.200000e+01 : f32
    %199 = vector.broadcast %cst_84 : f32 to vector<16x1xf32>
    %200 = arith.divf %198, %199 : vector<16x1xf32>
    %201 = vector.broadcast %191 : vector<16x1xf32> to vector<16x32xf32>
    %202 = arith.subf %187, %201 : vector<16x32xf32>
    %cst_85 = arith.constant 9.99999974E-6 : f32
    %203 = vector.broadcast %cst_85 : f32 to vector<16x1xf32>
    %204 = arith.addf %200, %203 : vector<16x1xf32>
    %205 = math.rsqrt %204 : vector<16x1xf32>
    %206 = vector.broadcast %205 : vector<16x1xf32> to vector<16x32xf32>
    %207 = arith.mulf %202, %206 : vector<16x32xf32>
    %c0_86 = arith.constant 0 : index
    %c0_87 = arith.constant 0 : index
    %c0_88 = arith.constant 0 : index
    %208 = vector.load %arg9[%c0_86, %c0_87, %c0_88] : memref<1x1x32xf32, #tpu.memory_space<vmem>>, vector<1x1x32xf32>
    %209 = vector.shape_cast %208 : vector<1x1x32xf32> to vector<1x32xf32>
    %210 = vector.broadcast %209 : vector<1x32xf32> to vector<16x32xf32>
    %211 = arith.mulf %207, %210 : vector<16x32xf32>
    %c0_89 = arith.constant 0 : index
    %c0_90 = arith.constant 0 : index
    %c0_91 = arith.constant 0 : index
    %212 = vector.load %arg10[%c0_89, %c0_90, %c0_91] : memref<1x1x32xf32, #tpu.memory_space<vmem>>, vector<1x1x32xf32>
    %213 = vector.shape_cast %212 : vector<1x1x32xf32> to vector<1x32xf32>
    %214 = vector.broadcast %213 : vector<1x32xf32> to vector<16x32xf32>
    %215 = arith.addf %211, %214 : vector<16x32xf32>
    %c0_92 = arith.constant 0 : index
    %c0_93 = arith.constant 0 : index
    %c0_94 = arith.constant 0 : index
    %216 = vector.load %arg11[%c0_92, %c0_93, %c0_94] : memref<1x32x128xf32, #tpu.memory_space<vmem>>, vector<1x32x128xf32>
    %217 = vector.shape_cast %216 : vector<1x32x128xf32> to vector<32x128xf32>
    %cst_95 = arith.constant dense<0.000000e+00> : vector<16x128xf32>
    %218 = tpu.matmul %215, %217, %cst_95 {dimension_numbers = #tpu.dot_dimension_numbers<[1], [0], [0], [1], [0, 0, 1, 1], [], []>} : vector<16x32xf32>, vector<32x128xf32>, vector<16x128xf32> -> vector<16x128xf32>
    %c0_96 = arith.constant 0 : index
    %c0_97 = arith.constant 0 : index
    %c0_98 = arith.constant 0 : index
    %219 = vector.load %arg12[%c0_96, %c0_97, %c0_98] : memref<1x1x128xf32, #tpu.memory_space<vmem>>, vector<1x1x128xf32>
    %220 = vector.shape_cast %219 : vector<1x1x128xf32> to vector<1x128xf32>
    %221 = vector.broadcast %220 : vector<1x128xf32> to vector<16x128xf32>
    %222 = arith.addf %218, %221 : vector<16x128xf32>
    %cst_99 = arith.constant 0.000000e+00 : f32
    %223 = vector.broadcast %cst_99 : f32 to vector<16x128xf32>
    %224 = arith.maximumf %222, %223 : vector<16x128xf32>
    %c0_100 = arith.constant 0 : index
    %c0_101 = arith.constant 0 : index
    %c0_102 = arith.constant 0 : index
    %225 = vector.load %arg13[%c0_100, %c0_101, %c0_102] : memref<1x128x32xf32, #tpu.memory_space<vmem>>, vector<1x128x32xf32>
    %226 = vector.shape_cast %225 : vector<1x128x32xf32> to vector<128x32xf32>
    %cst_103 = arith.constant dense<0.000000e+00> : vector<16x32xf32>
    %227 = tpu.matmul %224, %226, %cst_103 {dimension_numbers = #tpu.dot_dimension_numbers<[1], [0], [0], [1], [0, 0, 1, 1], [], []>} : vector<16x128xf32>, vector<128x32xf32>, vector<16x32xf32> -> vector<16x32xf32>
    %c0_104 = arith.constant 0 : index
    %c0_105 = arith.constant 0 : index
    %c0_106 = arith.constant 0 : index
    %228 = vector.load %arg14[%c0_104, %c0_105, %c0_106] : memref<1x1x32xf32, #tpu.memory_space<vmem>>, vector<1x1x32xf32>
    %229 = vector.shape_cast %228 : vector<1x1x32xf32> to vector<1x32xf32>
    %230 = vector.broadcast %229 : vector<1x32xf32> to vector<16x32xf32>
    %231 = arith.addf %227, %230 : vector<16x32xf32>
    %232 = arith.addf %231, %215 : vector<16x32xf32>
    %cst_107 = arith.constant dense<0.000000e+00> : vector<16xf32>
    %233 = vector.multi_reduction <add>, %232, %cst_107 [1] : vector<16x32xf32> to vector<16xf32>
    %234 = vector.shape_cast %233 : vector<16xf32> to vector<16x1xf32>
    %cst_108 = arith.constant 3.200000e+01 : f32
    %235 = vector.broadcast %cst_108 : f32 to vector<16x1xf32>
    %236 = arith.divf %234, %235 : vector<16x1xf32>
    %237 = vector.broadcast %236 : vector<16x1xf32> to vector<16x32xf32>
    %238 = arith.subf %232, %237 : vector<16x32xf32>
    %239 = vector.broadcast %236 : vector<16x1xf32> to vector<16x32xf32>
    %240 = arith.subf %232, %239 : vector<16x32xf32>
    %241 = arith.mulf %238, %240 : vector<16x32xf32>
    %cst_109 = arith.constant dense<0.000000e+00> : vector<16xf32>
    %242 = vector.multi_reduction <add>, %241, %cst_109 [1] : vector<16x32xf32> to vector<16xf32>
    %243 = vector.shape_cast %242 : vector<16xf32> to vector<16x1xf32>
    %cst_110 = arith.constant 3.200000e+01 : f32
    %244 = vector.broadcast %cst_110 : f32 to vector<16x1xf32>
    %245 = arith.divf %243, %244 : vector<16x1xf32>
    %246 = vector.broadcast %236 : vector<16x1xf32> to vector<16x32xf32>
    %247 = arith.subf %232, %246 : vector<16x32xf32>
    %cst_111 = arith.constant 9.99999974E-6 : f32
    %248 = vector.broadcast %cst_111 : f32 to vector<16x1xf32>
    %249 = arith.addf %245, %248 : vector<16x1xf32>
    %250 = math.rsqrt %249 : vector<16x1xf32>
    %251 = vector.broadcast %250 : vector<16x1xf32> to vector<16x32xf32>
    %252 = arith.mulf %247, %251 : vector<16x32xf32>
    %c0_112 = arith.constant 0 : index
    %c0_113 = arith.constant 0 : index
    %c0_114 = arith.constant 0 : index
    %253 = vector.load %arg15[%c0_112, %c0_113, %c0_114] : memref<1x1x32xf32, #tpu.memory_space<vmem>>, vector<1x1x32xf32>
    %254 = vector.shape_cast %253 : vector<1x1x32xf32> to vector<1x32xf32>
    %255 = vector.broadcast %254 : vector<1x32xf32> to vector<16x32xf32>
    %256 = arith.mulf %252, %255 : vector<16x32xf32>
    %c0_115 = arith.constant 0 : index
    %c0_116 = arith.constant 0 : index
    %c0_117 = arith.constant 0 : index
    %257 = vector.load %arg16[%c0_115, %c0_116, %c0_117] : memref<1x1x32xf32, #tpu.memory_space<vmem>>, vector<1x1x32xf32>
    %258 = vector.shape_cast %257 : vector<1x1x32xf32> to vector<1x32xf32>
    %259 = vector.broadcast %258 : vector<1x32xf32> to vector<16x32xf32>
    %260 = arith.addf %256, %259 : vector<16x32xf32>
    %c0_118 = arith.constant 0 : index
    %c0_119 = arith.constant 0 : index
    %261 = vector.load %arg17[%c0_118, %c0_119] : memref<16x32xf32, #tpu.memory_space<vmem>>, vector<16x32xf32>
    tpu.vector_store %arg17[%c0_118, %c0_119], %260 {strides = array<i32>} : memref<16x32xf32, #tpu.memory_space<vmem>>, vector<16x32xf32>,
    return
  }
  func.func @transform_0(%arg0: i32) -> (i32, i32) {
    %c0_i32 = arith.constant 0 : i32
    %c0_i32_0 = arith.constant 0 : i32
    %c0_i32_1 = arith.constant 0 : i32
    return %c0_i32, %c0_i32_0 : i32, i32
  }
  func.func @transform_1(%arg0: i32) -> (i32, i32) {
    %c0_i32 = arith.constant 0 : i32
    %c0_i32_0 = arith.constant 0 : i32
    %c0_i32_1 = arith.constant 0 : i32
    return %c0_i32, %c0_i32_0 : i32, i32
  }
  func.func @transform_2(%arg0: i32) -> (i32, i32, i32) {
    %c0_i32 = arith.constant 0 : i32
    %c0_i32_0 = arith.constant 0 : i32
    %c0_i32_1 = arith.constant 0 : i32
    %c0_i32_2 = arith.constant 0 : i32
    return %c0_i32, %c0_i32_0, %c0_i32_1 : i32, i32, i32
  }
  func.func @transform_3(%arg0: i32) -> (i32, i32, i32) {
    %c0_i32 = arith.constant 0 : i32
    %c0_i32_0 = arith.constant 0 : i32
    %c0_i32_1 = arith.constant 0 : i32
    return %arg0, %c0_i32, %c0_i32_0 : i32, i32, i32
  }
  func.func @transform_4(%arg0: i32) -> (i32, i32, i32) {
    %c0_i32 = arith.constant 0 : i32
    %c0_i32_0 = arith.constant 0 : i32
    %c0_i32_1 = arith.constant 0 : i32
    return %arg0, %c0_i32, %c0_i32_0 : i32, i32, i32
  }
  func.func @transform_5(%arg0: i32) -> (i32, i32, i32) {
    %c0_i32 = arith.constant 0 : i32
    %c0_i32_0 = arith.constant 0 : i32
    %c0_i32_1 = arith.constant 0 : i32
    return %arg0, %c0_i32, %c0_i32_0 : i32, i32, i32
  }
  func.func @transform_6(%arg0: i32) -> (i32, i32, i32) {
    %c0_i32 = arith.constant 0 : i32
    %c0_i32_0 = arith.constant 0 : i32
    %c0_i32_1 = arith.constant 0 : i32
    return %arg0, %c0_i32, %c0_i32_0 : i32, i32, i32
  }
  func.func @transform_7(%arg0: i32) -> (i32, i32, i32) {
    %c0_i32 = arith.constant 0 : i32
    %c0_i32_0 = arith.constant 0 : i32
    %c0_i32_1 = arith.constant 0 : i32
    return %arg0, %c0_i32, %c0_i32_0 : i32, i32, i32
  }
  func.func @transform_8(%arg0: i32) -> (i32, i32, i32) {
    %c0_i32 = arith.constant 0 : i32
    %c0_i32_0 = arith.constant 0 : i32
    %c0_i32_1 = arith.constant 0 : i32
    return %arg0, %c0_i32, %c0_i32_0 : i32, i32, i32
  }
  func.func @transform_9(%arg0: i32) -> (i32, i32, i32) {
    %c0_i32 = arith.constant 0 : i32
    %c0_i32_0 = arith.constant 0 : i32
    %c0_i32_1 = arith.constant 0 : i32
    return %arg0, %c0_i32, %c0_i32_0 : i32, i32, i32
  }
  func.func @transform_10(%arg0: i32) -> (i32, i32, i32) {
    %c0_i32 = arith.constant 0 : i32
    %c0_i32_0 = arith.constant 0 : i32
    %c0_i32_1 = arith.constant 0 : i32
    return %arg0, %c0_i32, %c0_i32_0 : i32, i32, i32
  }
  func.func @transform_11(%arg0: i32) -> (i32, i32, i32) {
    %c0_i32 = arith.constant 0 : i32
    %c0_i32_0 = arith.constant 0 : i32
    %c0_i32_1 = arith.constant 0 : i32
    return %arg0, %c0_i32, %c0_i32_0 : i32, i32, i32
  }
  func.func @transform_12(%arg0: i32) -> (i32, i32, i32) {
    %c0_i32 = arith.constant 0 : i32
    %c0_i32_0 = arith.constant 0 : i32
    %c0_i32_1 = arith.constant 0 : i32
    return %arg0, %c0_i32, %c0_i32_0 : i32, i32, i32
  }
  func.func @transform_13(%arg0: i32) -> (i32, i32, i32) {
    %c0_i32 = arith.constant 0 : i32
    %c0_i32_0 = arith.constant 0 : i32
    %c0_i32_1 = arith.constant 0 : i32
    return %arg0, %c0_i32, %c0_i32_0 : i32, i32, i32
  }
  func.func @transform_14(%arg0: i32) -> (i32, i32, i32) {
    %c0_i32 = arith.constant 0 : i32
    %c0_i32_0 = arith.constant 0 : i32
    %c0_i32_1 = arith.constant 0 : i32
    return %arg0, %c0_i32, %c0_i32_0 : i32, i32, i32
  }
  func.func @transform_15(%arg0: i32) -> (i32, i32, i32) {
    %c0_i32 = arith.constant 0 : i32
    %c0_i32_0 = arith.constant 0 : i32
    %c0_i32_1 = arith.constant 0 : i32
    return %arg0, %c0_i32, %c0_i32_0 : i32, i32, i32
  }
  func.func @transform_16(%arg0: i32) -> (i32, i32) {
    %c0_i32 = arith.constant 0 : i32
    %c0_i32_0 = arith.constant 0 : i32
    %c0_i32_1 = arith.constant 0 : i32
    return %c0_i32, %c0_i32_0 : i32, i32
  }
}

</mosaic_0001>

<llo_original>
// kernel: tpu_custom_call.1
$region0: #{tpu_custom_call.1}
  #allocation0 [shape = 'u32[]', space=smem, size = 0x4, offset = 0x4, fixed_abs, tag = 'smem constant byte address 0x4 - core index']
  #allocation1 [shape = 'u32[72,128]{1,0:T(1,128)}', space=vmem, size = 0x9000, scoped, tag = 'internal scratch']
  %s0 = inlined_call_operand.hbm [shape: f32[16,32], index: 0, kind: input, shape index: {}]
  %s1 = inlined_call_operand.hbm [shape: f32[16,32], index: 1, kind: input, shape index: {}]
  %s2 = inlined_call_operand.hbm [shape: f32[2,8,8], index: 2, kind: input, shape index: {}]
  %s3 = inlined_call_operand.vmem [shape: f32[2,32,32], index: 3, kind: input, shape index: {}]
  %s4 = inlined_call_operand.vmem [shape: f32[2,32,32], index: 4, kind: input, shape index: {}]
  %s5 = inlined_call_operand.vmem [shape: f32[2,32,32], index: 5, kind: input, shape index: {}]
  %s6 = inlined_call_operand.vmem [shape: f32[2,32,32], index: 6, kind: input, shape index: {}]
  %s7 = inlined_call_operand.vmem [shape: f32[2,1,32], index: 7, kind: input, shape index: {}]
  %s8 = inlined_call_operand.vmem [shape: f32[2,1,32], index: 8, kind: input, shape index: {}]
  %s9 = inlined_call_operand.vmem [shape: f32[2,1,32], index: 9, kind: input, shape index: {}]
  %s10 = inlined_call_operand.vmem [shape: f32[2,32,128], index: 10, kind: input, shape index: {}]
  %s11 = inlined_call_operand.hbm [shape: f32[2,1,128], index: 11, kind: input, shape index: {}]
  %s12 = inlined_call_operand.vmem [shape: f32[2,128,32], index: 12, kind: input, shape index: {}]
  %s13 = inlined_call_operand.vmem [shape: f32[2,1,32], index: 13, kind: input, shape index: {}]
  %s14 = inlined_call_operand.vmem [shape: f32[2,1,32], index: 14, kind: input, shape index: {}]
  %s15 = inlined_call_operand.hbm [shape: f32[2,1,32], index: 15, kind: input, shape index: {}]
  %s16 = inlined_call_operand.hbm [shape: f32[16,32], index: 16, kind: output, shape index: {}]
  %s17 = sld [smem:[#allocation0]]
  $region121: #{tpu_custom_call.1} parent=0
    _
  %s19 = ssub.s32 1, %s17
  %s20 = scalar_select 0, %s19, %s17
  $region1: #{tpu_custom_call.1} parent=0
    #allocation2 [shape = 'u8[8192]{0}', space=vmem, size = 0x2000, scoped, tag = 'input window, operand 0, single buffered']
    #allocation3 [shape = 's32[2]{0}', space=sflag, size = 0x8, scoped, tag = 'scoped memory for tpu_custom_call.1']
    #allocation4 [shape = 's32[2]{0}', space=sflag, size = 0x8, scoped, tag = 'scoped memory for tpu_custom_call.1']
    #allocation5 [shape = 'u8[8192]{0}', space=vmem, size = 0x2000, scoped, tag = 'input window, operand 1, single buffered']
    #allocation6 [shape = 's32[1]{0}', space=sflag, size = 0x4, scoped, tag = 'scoped memory for tpu_custom_call.1']
    #allocation7 [shape = 'u8[8192]{0}', space=vmem, size = 0x2000, scoped, tag = 'input window, operand 2, single buffered']
    #allocation8 [shape = 'u8[1024]{0}', space=vmem, size = 0x400, scoped, tag = 'input window, operand 11']
    #allocation9 [shape = 's32[2]{0}', space=sflag, size = 0x8, scoped, tag = 'scoped memory for tpu_custom_call.1']
    #allocation10 [shape = 'u8[1024]{0}', space=vmem, size = 0x400, scoped, tag = 'input window, operand 15']
    #allocation11 [shape = 'u8[8192]{0}', space=vmem, size = 0x2000, scoped, tag = 'output window, operand 0, single buffered']
    %21 = vsyncpa [#allocation3], 0
    %22 = vsyncpa [#allocation6], 0
    %23 = vsyncpa [#allocation9], 0
    %s24 = scalar_lea.sflag [#allocation9], 1
    %25 = vsyncpa %s24, 0
    %26 = vsyncpa [#allocation4], 0
    loop: start=0, step=1, limit=4
    $region2: #{tpu_custom_call.1} parent=1 // loop_pre_header
      _
    $region3: #{tpu_custom_call.1} parent=1 // loop_header
      %s28 = sphi 0, %s32
      %p29 = scmp.ge.s32.totalorder %s28, 4
      %s36 = sphi 0, %s36
      %s38 = sphi 0, %s36
      %s39 = sphi 0, %s38
      %s53 = sphi 0, %s39
      %s57 = sphi 0, %s57
      %s59 = sphi 0, %s57
      %s60 = sphi 0, %s59
      %s74 = sphi 0, %s60
      %s78 = sphi 0, %s78
      %s80 = sphi 0, %s78
      %s81 = sphi 0, %s80
      %s95 = sphi 0, %s81
      %s101 = sphi 0, %s103
      %s104 = sphi 0, %s101
      %s105 = sphi 0, %s104
      %s121 = sphi 0, %s105
      %s127 = sphi 0, %s129
      %s130 = sphi 0, %s127
      %s131 = sphi 0, %s130
      %s147 = sphi 0, %s131
      %s153 = sphi 0, %s155
      %s156 = sphi 0, %s153
      %s157 = sphi 0, %s156
      %s173 = sphi 0, %s157
      %s179 = sphi 0, %s181
      %s182 = sphi 0, %s179
      %s183 = sphi 0, %s182
      %s199 = sphi 0, %s183
      %s205 = sphi 0, %s207
      %s208 = sphi 0, %s205
      %s209 = sphi 0, %s208
      %s225 = sphi 0, %s209
      %s231 = sphi 0, %s233
      %s234 = sphi 0, %s231
      %s235 = sphi 0, %s234
      %s251 = sphi 0, %s235
      %s257 = sphi 0, %s259
      %s260 = sphi 0, %s257
      %s261 = sphi 0, %s260
      %s277 = sphi 0, %s261
      %s283 = sphi 0, %s285
      %s286 = sphi 0, %s283
      %s287 = sphi 0, %s286
      %s303 = sphi 0, %s287
      %s309 = sphi 0, %s311
      %s312 = sphi 0, %s309
      %s313 = sphi 0, %s312
      %s329 = sphi 0, %s313
      %s335 = sphi 0, %s337
      %s338 = sphi 0, %s335
      %s339 = sphi 0, %s338
      %s355 = sphi 0, %s339
      %s361 = sphi 0, %s363
      %s364 = sphi 0, %s361
      %s365 = sphi 0, %s364
      %s381 = sphi 0, %s365
      %s387 = sphi 0, %s389
      %s390 = sphi 0, %s387
      %s391 = sphi 0, %s390
      %s407 = sphi 0, %s391
      %s413 = sphi 0, %s415
      %s416 = sphi 0, %s413
      %s417 = sphi 0, %s416
      %s433 = sphi 0, %s417
      %s437 = sphi 0, %s437
      %s439 = sphi 0, %s437
      %s440 = sphi 0, %s439
      %s454 = sphi 0, %s440
    $region4: #{tpu_custom_call.1} parent=1 // loop_header_branch
      %31 = sbr.rel (%p29) target = $region8
    $region5: #{tpu_custom_call.1} parent=1 // loop_body
      %s33 = ssub.s32 %s28, 1
      %s34 = ssub.s32 %s28, 2
      %s35 = sadd.s32 %s28, 1
      %s37 = sadd.s32 %s36, 1
      %p40 = scmp.eq.s32.totalorder %s28, 1
      %p41 = scmp.ne.s32.totalorder %s36, %s38
      %p42 = scmp.eq.s32.totalorder %s28, 0
      %p43 = por %p41, %p42
      %p44 = scmp.ne.s32.totalorder %s36, %s38
      %p45 = scmp.eq.s32.totalorder %s33, 1
      %p46 = por %p44, %p45
      %p47 = scmp.ne.s32.totalorder %s38, %s39
      %p48 = scmp.eq.s32.totalorder %s33, 0
      %p49 = por %p47, %p48
      %p50 = scmp.ne.s32.totalorder %s38, %s39
      %p51 = scmp.eq.s32.totalorder %s34, 1
      %p52 = por %p50, %p51
      %p54 = scmp.ne.s32.totalorder %s39, %s53
      %p55 = scmp.eq.s32.totalorder %s34, 0
      %p56 = por %p54, %p55
      %s58 = sadd.s32 %s57, 1
      %p61 = scmp.eq.s32.totalorder %s28, 1
      %p62 = scmp.ne.s32.totalorder %s57, %s59
      %p63 = scmp.eq.s32.totalorder %s28, 0
      %p64 = por %p62, %p63
      %p65 = scmp.ne.s32.totalorder %s57, %s59
      %p66 = scmp.eq.s32.totalorder %s33, 1
      %p67 = por %p65, %p66
      %p68 = scmp.ne.s32.totalorder %s59, %s60
      %p69 = scmp.eq.s32.totalorder %s33, 0
      %p70 = por %p68, %p69
      %p71 = scmp.ne.s32.totalorder %s59, %s60
      %p72 = scmp.eq.s32.totalorder %s34, 1
      %p73 = por %p71, %p72
      %p75 = scmp.ne.s32.totalorder %s60, %s74
      %p76 = scmp.eq.s32.totalorder %s34, 0
      %p77 = por %p75, %p76
      %s79 = sadd.s32 %s78, 1
      %p82 = scmp.eq.s32.totalorder %s28, 1
      %p83 = scmp.ne.s32.totalorder %s78, %s80
      %p84 = scmp.eq.s32.totalorder %s28, 0
      %p85 = por %p83, %p84
      %p86 = scmp.ne.s32.totalorder %s78, %s80
      %p87 = scmp.eq.s32.totalorder %s33, 1
      %p88 = por %p86, %p87
      %p89 = scmp.ne.s32.totalorder %s80, %s81
      %p90 = scmp.eq.s32.totalorder %s33, 0
      %p91 = por %p89, %p90
      %p92 = scmp.ne.s32.totalorder %s80, %s81
      %p93 = scmp.eq.s32.totalorder %s34, 1
      %p94 = por %p92, %p93
      %p96 = scmp.ne.s32.totalorder %s81, %s95
      %p97 = scmp.eq.s32.totalorder %s34, 0
      %p98 = por %p96, %p97
      %s99 = ssub.s32 %s28, %s35
      %p100 = scmp.eq.s32.totalorder %s99, 0
      %s102 = sadd.s32 %s101, 1
      %s103 = scalar_select %p100, %s101, %s102
      %p106 = pneg %p100
      %p107 = scmp.eq.s32.totalorder %s28, 1
      %p108 = por %p106, %p107
      %p109 = scmp.ne.s32.totalorder %s101, %s104
      %p110 = scmp.eq.s32.totalorder %s28, 0
      %p111 = por %p109, %p110
      %p112 = scmp.ne.s32.totalorder %s101, %s104
      %p113 = scmp.eq.s32.totalorder %s33, 1
      %p114 = por %p112, %p113
      %p115 = scmp.ne.s32.totalorder %s104, %s105
      %p116 = scmp.eq.s32.totalorder %s33, 0
      %p117 = por %p115, %p116
      %p118 = scmp.ne.s32.totalorder %s104, %s105
      %p119 = scmp.eq.s32.totalorder %s34, 1
      %p120 = por %p118, %p119
      %p122 = scmp.ne.s32.totalorder %s105, %s121
      %p123 = scmp.eq.s32.totalorder %s34, 0
      %p124 = por %p122, %p123
      %s125 = ssub.s32 %s28, %s35
      %p126 = scmp.eq.s32.totalorder %s125, 0
      %s128 = sadd.s32 %s127, 1
      %s129 = scalar_select %p126, %s127, %s128
      %p132 = pneg %p126
      %p133 = scmp.eq.s32.totalorder %s28, 1
      %p134 = por %p132, %p133
      %p135 = scmp.ne.s32.totalorder %s127, %s130
      %p136 = scmp.eq.s32.totalorder %s28, 0
      %p137 = por %p135, %p136
      %p138 = scmp.ne.s32.totalorder %s127, %s130
      %p139 = scmp.eq.s32.totalorder %s33, 1
      %p140 = por %p138, %p139
      %p141 = scmp.ne.s32.totalorder %s130, %s131
      %p142 = scmp.eq.s32.totalorder %s33, 0
      %p143 = por %p141, %p142
      %p144 = scmp.ne.s32.totalorder %s130, %s131
      %p145 = scmp.eq.s32.totalorder %s34, 1
      %p146 = por %p144, %p145
      %p148 = scmp.ne.s32.totalorder %s131, %s147
      %p149 = scmp.eq.s32.totalorder %s34, 0
      %p150 = por %p148, %p149
      %s151 = ssub.s32 %s28, %s35
      %p152 = scmp.eq.s32.totalorder %s151, 0
      %s154 = sadd.s32 %s153, 1
      %s155 = scalar_select %p152, %s153, %s154
      %p158 = pneg %p152
      %p159 = scmp.eq.s32.totalorder %s28, 1
      %p160 = por %p158, %p159
      %p161 = scmp.ne.s32.totalorder %s153, %s156
      %p162 = scmp.eq.s32.totalorder %s28, 0
      %p163 = por %p161, %p162
      %p164 = scmp.ne.s32.totalorder %s153, %s156
      %p165 = scmp.eq.s32.totalorder %s33, 1
      %p166 = por %p164, %p165
      %p167 = scmp.ne.s32.totalorder %s156, %s157
      %p168 = scmp.eq.s32.totalorder %s33, 0
      %p169 = por %p167, %p168
      %p170 = scmp.ne.s32.totalorder %s156, %s157
      %p171 = scmp.eq.s32.totalorder %s34, 1
      %p172 = por %p170, %p171
      %p174 = scmp.ne.s32.totalorder %s157, %s173
      %p175 = scmp.eq.s32.totalorder %s34, 0
      %p176 = por %p174, %p175
      %s177 = ssub.s32 %s28, %s35
      %p178 = scmp.eq.s32.totalorder %s177, 0
      %s180 = sadd.s32 %s179, 1
      %s181 = scalar_select %p178, %s179, %s180
      %p184 = pneg %p178
      %p185 = scmp.eq.s32.totalorder %s28, 1
      %p186 = por %p184, %p185
      %p187 = scmp.ne.s32.totalorder %s179, %s182
      %p188 = scmp.eq.s32.totalorder %s28, 0
      %p189 = por %p187, %p188
      %p190 = scmp.ne.s32.totalorder %s179, %s182
      %p191 = scmp.eq.s32.totalorder %s33, 1
      %p192 = por %p190, %p191
      %p193 = scmp.ne.s32.totalorder %s182, %s183
      %p194 = scmp.eq.s32.totalorder %s33, 0
      %p195 = por %p193, %p194
      %p196 = scmp.ne.s32.totalorder %s182, %s183
      %p197 = scmp.eq.s32.totalorder %s34, 1
      %p198 = por %p196, %p197
      %p200 = scmp.ne.s32.totalorder %s183, %s199
      %p201 = scmp.eq.s32.totalorder %s34, 0
      %p202 = por %p200, %p201
      %s203 = ssub.s32 %s28, %s35
      %p204 = scmp.eq.s32.totalorder %s203, 0
      %s206 = sadd.s32 %s205, 1
      %s207 = scalar_select %p204, %s205, %s206
      %p210 = pneg %p204
      %p211 = scmp.eq.s32.totalorder %s28, 1
      %p212 = por %p210, %p211
      %p213 = scmp.ne.s32.totalorder %s205, %s208
      %p214 = scmp.eq.s32.totalorder %s28, 0
      %p215 = por %p213, %p214
      %p216 = scmp.ne.s32.totalorder %s205, %s208
      %p217 = scmp.eq.s32.totalorder %s33, 1
      %p218 = por %p216, %p217
      %p219 = scmp.ne.s32.totalorder %s208, %s209
      %p220 = scmp.eq.s32.totalorder %s33, 0
      %p221 = por %p219, %p220
      %p222 = scmp.ne.s32.totalorder %s208, %s209
      %p223 = scmp.eq.s32.totalorder %s34, 1
      %p224 = por %p222, %p223
      %p226 = scmp.ne.s32.totalorder %s209, %s225
      %p227 = scmp.eq.s32.totalorder %s34, 0
      %p228 = por %p226, %p227
      %s229 = ssub.s32 %s28, %s35
      %p230 = scmp.eq.s32.totalorder %s229, 0
      %s232 = sadd.s32 %s231, 1
      %s233 = scalar_select %p230, %s231, %s232
      %p236 = pneg %p230
      %p237 = scmp.eq.s32.totalorder %s28, 1
      %p238 = por %p236, %p237
      %p239 = scmp.ne.s32.totalorder %s231, %s234
      %p240 = scmp.eq.s32.totalorder %s28, 0
      %p241 = por %p239, %p240
      %p242 = scmp.ne.s32.totalorder %s231, %s234
      %p243 = scmp.eq.s32.totalorder %s33, 1
      %p244 = por %p242, %p243
      %p245 = scmp.ne.s32.totalorder %s234, %s235
      %p246 = scmp.eq.s32.totalorder %s33, 0
      %p247 = por %p245, %p246
      %p248 = scmp.ne.s32.totalorder %s234, %s235
      %p249 = scmp.eq.s32.totalorder %s34, 1
      %p250 = por %p248, %p249
      %p252 = scmp.ne.s32.totalorder %s235, %s251
      %p253 = scmp.eq.s32.totalorder %s34, 0
      %p254 = por %p252, %p253
      %s255 = ssub.s32 %s28, %s35
      %p256 = scmp.eq.s32.totalorder %s255, 0
      %s258 = sadd.s32 %s257, 1
      %s259 = scalar_select %p256, %s257, %s258
      %p262 = pneg %p256
      %p263 = scmp.eq.s32.totalorder %s28, 1
      %p264 = por %p262, %p263
      %p265 = scmp.ne.s32.totalorder %s257, %s260
      %p266 = scmp.eq.s32.totalorder %s28, 0
      %p267 = por %p265, %p266
      %p268 = scmp.ne.s32.totalorder %s257, %s260
      %p269 = scmp.eq.s32.totalorder %s33, 1
      %p270 = por %p268, %p269
      %p271 = scmp.ne.s32.totalorder %s260, %s261
      %p272 = scmp.eq.s32.totalorder %s33, 0
      %p273 = por %p271, %p272
      %p274 = scmp.ne.s32.totalorder %s260, %s261
      %p275 = scmp.eq.s32.totalorder %s34, 1
      %p276 = por %p274, %p275
      %p278 = scmp.ne.s32.totalorder %s261, %s277
      %p279 = scmp.eq.s32.totalorder %s34, 0
      %p280 = por %p278, %p279
      %s281 = ssub.s32 %s28, %s35
      %p282 = scmp.eq.s32.totalorder %s281, 0
      %s284 = sadd.s32 %s283, 1
      %s285 = scalar_select %p282, %s283, %s284
      %p288 = pneg %p282
      %p289 = scmp.eq.s32.totalorder %s28, 1
      %p290 = por %p288, %p289
      %p291 = scmp.ne.s32.totalorder %s283, %s286
      %p292 = scmp.eq.s32.totalorder %s28, 0
      %p293 = por %p291, %p292
      %p294 = scmp.ne.s32.totalorder %s283, %s286
      %p295 = scmp.eq.s32.totalorder %s33, 1
      %p296 = por %p294, %p295
      %p297 = scmp.ne.s32.totalorder %s286, %s287
      %p298 = scmp.eq.s32.totalorder %s33, 0
      %p299 = por %p297, %p298
      %p300 = scmp.ne.s32.totalorder %s286, %s287
      %p301 = scmp.eq.s32.totalorder %s34, 1
      %p302 = por %p300, %p301
      %p304 = scmp.ne.s32.totalorder %s287, %s303
      %p305 = scmp.eq.s32.totalorder %s34, 0
      %p306 = por %p304, %p305
      %s307 = ssub.s32 %s28, %s35
      %p308 = scmp.eq.s32.totalorder %s307, 0
      %s310 = sadd.s32 %s309, 1
      %s311 = scalar_select %p308, %s309, %s310
      %p314 = pneg %p308
      %p315 = scmp.eq.s32.totalorder %s28, 1
      %p316 = por %p314, %p315
      %p317 = scmp.ne.s32.totalorder %s309, %s312
      %p318 = scmp.eq.s32.totalorder %s28, 0
      %p319 = por %p317, %p318
      %p320 = scmp.ne.s32.totalorder %s309, %s312
      %p321 = scmp.eq.s32.totalorder %s33, 1
      %p322 = por %p320, %p321
      %p323 = scmp.ne.s32.totalorder %s312, %s313
      %p324 = scmp.eq.s32.totalorder %s33, 0
      %p325 = por %p323, %p324
      %p326 = scmp.ne.s32.totalorder %s312, %s313
      %p327 = scmp.eq.s32.totalorder %s34, 1
      %p328 = por %p326, %p327
      %p330 = scmp.ne.s32.totalorder %s313, %s329
      %p331 = scmp.eq.s32.totalorder %s34, 0
      %p332 = por %p330, %p331
      %s333 = ssub.s32 %s28, %s35
      %p334 = scmp.eq.s32.totalorder %s333, 0
      %s336 = sadd.s32 %s335, 1
      %s337 = scalar_select %p334, %s335, %s336
      %p340 = pneg %p334
      %p341 = scmp.eq.s32.totalorder %s28, 1
      %p342 = por %p340, %p341
      %p343 = scmp.ne.s32.totalorder %s335, %s338
      %p344 = scmp.eq.s32.totalorder %s28, 0
      %p345 = por %p343, %p344
      %p346 = scmp.ne.s32.totalorder %s335, %s338
      %p347 = scmp.eq.s32.totalorder %s33, 1
      %p348 = por %p346, %p347
      %p349 = scmp.ne.s32.totalorder %s338, %s339
      %p350 = scmp.eq.s32.totalorder %s33, 0
      %p351 = por %p349, %p350
      %p352 = scmp.ne.s32.totalorder %s338, %s339
      %p353 = scmp.eq.s32.totalorder %s34, 1
      %p354 = por %p352, %p353
      %p356 = scmp.ne.s32.totalorder %s339, %s355
      %p357 = scmp.eq.s32.totalorder %s34, 0
      %p358 = por %p356, %p357
      %s359 = ssub.s32 %s28, %s35
      %p360 = scmp.eq.s32.totalorder %s359, 0
      %s362 = sadd.s32 %s361, 1
      %s363 = scalar_select %p360, %s361, %s362
      %p366 = pneg %p360
      %p367 = scmp.eq.s32.totalorder %s28, 1
      %p368 = por %p366, %p367
      %p369 = scmp.ne.s32.totalorder %s361, %s364
      %p370 = scmp.eq.s32.totalorder %s28, 0
      %p371 = por %p369, %p370
      %p372 = scmp.ne.s32.totalorder %s361, %s364
      %p373 = scmp.eq.s32.totalorder %s33, 1
      %p374 = por %p372, %p373
      %p375 = scmp.ne.s32.totalorder %s364, %s365
      %p376 = scmp.eq.s32.totalorder %s33, 0
      %p377 = por %p375, %p376
      %p378 = scmp.ne.s32.totalorder %s364, %s365
      %p379 = scmp.eq.s32.totalorder %s34, 1
      %p380 = por %p378, %p379
      %p382 = scmp.ne.s32.totalorder %s365, %s381
      %p383 = scmp.eq.s32.totalorder %s34, 0
      %p384 = por %p382, %p383
      %s385 = ssub.s32 %s28, %s35
      %p386 = scmp.eq.s32.totalorder %s385, 0
      %s388 = sadd.s32 %s387, 1
      %s389 = scalar_select %p386, %s387, %s388
      %p392 = pneg %p386
      %p393 = scmp.eq.s32.totalorder %s28, 1
      %p394 = por %p392, %p393
      %p395 = scmp.ne.s32.totalorder %s387, %s390
      %p396 = scmp.eq.s32.totalorder %s28, 0
      %p397 = por %p395, %p396
      %p398 = scmp.ne.s32.totalorder %s387, %s390
      %p399 = scmp.eq.s32.totalorder %s33, 1
      %p400 = por %p398, %p399
      %p401 = scmp.ne.s32.totalorder %s390, %s391
      %p402 = scmp.eq.s32.totalorder %s33, 0
      %p403 = por %p401, %p402
      %p404 = scmp.ne.s32.totalorder %s390, %s391
      %p405 = scmp.eq.s32.totalorder %s34, 1
      %p406 = por %p404, %p405
      %p408 = scmp.ne.s32.totalorder %s391, %s407
      %p409 = scmp.eq.s32.totalorder %s34, 0
      %p410 = por %p408, %p409
      %s411 = ssub.s32 %s28, %s35
      %p412 = scmp.eq.s32.totalorder %s411, 0
      %s414 = sadd.s32 %s413, 1
      %s415 = scalar_select %p412, %s413, %s414
      %p418 = pneg %p412
      %p419 = scmp.eq.s32.totalorder %s28, 1
      %p420 = por %p418, %p419
      %p421 = scmp.ne.s32.totalorder %s413, %s416
      %p422 = scmp.eq.s32.totalorder %s28, 0
      %p423 = por %p421, %p422
      %p424 = scmp.ne.s32.totalorder %s413, %s416
      %p425 = scmp.eq.s32.totalorder %s33, 1
      %p426 = por %p424, %p425
      %p427 = scmp.ne.s32.totalorder %s416, %s417
      %p428 = scmp.eq.s32.totalorder %s33, 0
      %p429 = por %p427, %p428
      %p430 = scmp.ne.s32.totalorder %s416, %s417
      %p431 = scmp.eq.s32.totalorder %s34, 1
      %p432 = por %p430, %p431
      %p434 = scmp.ne.s32.totalorder %s417, %s433
      %p435 = scmp.eq.s32.totalorder %s34, 0
      %p436 = por %p434, %p435
      %s438 = sadd.s32 %s437, 1
      %p441 = scmp.eq.s32.totalorder %s28, 1
      %p442 = scmp.ne.s32.totalorder %s437, %s439
      %p443 = scmp.eq.s32.totalorder %s28, 0
      %p444 = por %p442, %p443
      %p445 = scmp.ne.s32.totalorder %s437, %s439
      %p446 = scmp.eq.s32.totalorder %s33, 1
      %p447 = por %p445, %p446
      %p448 = scmp.ne.s32.totalorder %s439, %s440
      %p449 = scmp.eq.s32.totalorder %s33, 0
      %p450 = por %p448, %p449
      %p451 = scmp.ne.s32.totalorder %s439, %s440
      %p452 = scmp.eq.s32.totalorder %s34, 1
      %p453 = por %p451, %p452
      %p455 = scmp.ne.s32.totalorder %s440, %s454
      %p456 = scmp.eq.s32.totalorder %s34, 0
      %p457 = por %p455, %p456
      %p458 = scmp.le.s32.totalorder 1, %s28
      %p459 = scmp.lt.s32.totalorder %s28, 3
      %p460 = pnand %p458, %p459
      %p461 = pneg %p460
      // Predicated region
      $region9: #{tpu_custom_call.1} parent=5 // pred_check
        _
      $region10: #{tpu_custom_call.1} parent=5 // pred_check_branch
        %463 = sbr.rel (%p460) target = $region12
      $region11: #{tpu_custom_call.1} parent=5 // pred_region
        %s464 = ssub.s32 %s28, 1
        // Predicated region
        $region13: #{tpu_custom_call.1} parent=11 // pred_check
          %p465 = pneg %p49
        $region14: #{tpu_custom_call.1} parent=11 // pred_check_branch
          %467 = sbr.rel (%p465) target = $region16
        $region15: #{tpu_custom_call.1} parent=11 // pred_region
          %469 = vsyncadd [#allocation3], 0
          %s470 = sshll.u32 %s0, 4
          %s471 = int_to_ptr.hbm [resolvable:$true] %s470
          %s472 = sshll.u32 [#allocation2], 4
          %s473 = int_to_ptr.vmem [resolvable:$true] %s472
          %478 = dma.hbm_to_vmem [thread:$0]  %s471, 256, %s473, [#allocation3], 128, 128, 8
        $region16: #{tpu_custom_call.1} parent=11 // pred_fallthru
          _
        // Predicated region
        $region17: #{tpu_custom_call.1} parent=11 // pred_check
          %p479 = pneg %p70
        $region18: #{tpu_custom_call.1} parent=11 // pred_check_branch
          %481 = sbr.rel (%p479) target = $region20
        $region19: #{tpu_custom_call.1} parent=11 // pred_region
          %483 = vsyncadd [#allocation6], 0
          %s484 = sshll.u32 %s1, 4
          %s485 = int_to_ptr.hbm [resolvable:$true] %s484
          %s486 = sshll.u32 [#allocation5], 4
          %s487 = int_to_ptr.vmem [resolvable:$true] %s486
          %492 = dma.hbm_to_vmem [thread:$0]  %s485, 256, %s487, [#allocation6], 128, 128, 8
        $region20: #{tpu_custom_call.1} parent=11 // pred_fallthru
          _
        // Predicated region
        $region21: #{tpu_custom_call.1} parent=11 // pred_check
          %p493 = pneg %p91
        $region22: #{tpu_custom_call.1} parent=11 // pred_check_branch
          %495 = sbr.rel (%p493) target = $region24
        $region23: #{tpu_custom_call.1} parent=11 // pred_region
          %497 = vsyncadd [#allocation6], 0
          %s498 = sshll.u32 %s2, 4
          %s499 = int_to_ptr.hbm [resolvable:$true] %s498
          %s500 = sshll.u32 [#allocation7], 4
          %s501 = int_to_ptr.vmem [resolvable:$true] %s500
          %506 = dma.hbm_to_vmem [thread:$0]  %s499, 256, %s501, [#allocation6], 128, 128, 8
        $region24: #{tpu_custom_call.1} parent=11 // pred_fallthru
          _
      $region12: #{tpu_custom_call.1} parent=5 // pred_fallthru
        _
      %p507 = scmp.lt.s32.totalorder %s28, 2
      // Predicated region
      $region25: #{tpu_custom_call.1} parent=5 // pred_check
        %p508 = pneg %p507
      $region26: #{tpu_custom_call.1} parent=5 // pred_check_branch
        %510 = sbr.rel (%p508) target = $region28
      $region27: #{tpu_custom_call.1} parent=5 // pred_region
        // Predicated region
        $region29: #{tpu_custom_call.1} parent=27 // pred_check
          %p511 = pneg %p111
        $region30: #{tpu_custom_call.1} parent=27 // pred_check_branch
          %513 = sbr.rel (%p511) target = $region32
        $region31: #{tpu_custom_call.1} parent=27 // pred_region
          %p514 = scmp.lt.s32.totalorder %s28, 1
          %s515 = scalar_select %p514, %s28, 1
          %s516 = smul.addr %s515, 4
          %s517 = smul.addr %s516, 8
          %s518 = scalar_lea.vmem %s3, %s517
        $region32: #{tpu_custom_call.1} parent=27 // pred_fallthru
          _
        // Predicated region
        $region33: #{tpu_custom_call.1} parent=27 // pred_check
          %p519 = pneg %p137
        $region34: #{tpu_custom_call.1} parent=27 // pred_check_branch
          %521 = sbr.rel (%p519) target = $region36
        $region35: #{tpu_custom_call.1} parent=27 // pred_region
          %p522 = scmp.lt.s32.totalorder %s28, 1
          %s523 = scalar_select %p522, %s28, 1
          %s524 = smul.addr %s523, 4
          %s525 = smul.addr %s524, 8
          %s526 = scalar_lea.vmem %s4, %s525
        $region36: #{tpu_custom_call.1} parent=27 // pred_fallthru
          _
        // Predicated region
        $region37: #{tpu_custom_call.1} parent=27 // pred_check
          %p527 = pneg %p163
        $region38: #{tpu_custom_call.1} parent=27 // pred_check_branch
          %529 = sbr.rel (%p527) target = $region40
        $region39: #{tpu_custom_call.1} parent=27 // pred_region
          %p530 = scmp.lt.s32.totalorder %s28, 1
          %s531 = scalar_select %p530, %s28, 1
          %s532 = smul.addr %s531, 4
          %s533 = smul.addr %s532, 8
          %s534 = scalar_lea.vmem %s5, %s533
        $region40: #{tpu_custom_call.1} parent=27 // pred_fallthru
          _
        // Predicated region
        $region41: #{tpu_custom_call.1} parent=27 // pred_check
          %p535 = pneg %p189
        $region42: #{tpu_custom_call.1} parent=27 // pred_check_branch
          %537 = sbr.rel (%p535) target = $region44
        $region43: #{tpu_custom_call.1} parent=27 // pred_region
          %p538 = scmp.lt.s32.totalorder %s28, 1
          %s539 = scalar_select %p538, %s28, 1
          %s540 = smul.addr %s539, 4
          %s541 = smul.addr %s540, 8
          %s542 = scalar_lea.vmem %s6, %s541
        $region44: #{tpu_custom_call.1} parent=27 // pred_fallthru
          _
        // Predicated region
        $region45: #{tpu_custom_call.1} parent=27 // pred_check
          %p543 = pneg %p215
        $region46: #{tpu_custom_call.1} parent=27 // pred_check_branch
          %545 = sbr.rel (%p543) target = $region48
        $region47: #{tpu_custom_call.1} parent=27 // pred_region
          %p546 = scmp.lt.s32.totalorder %s28, 1
          %s547 = scalar_select %p546, %s28, 1
          %s548 = scalar_lea.vmem %s7, %s547
        $region48: #{tpu_custom_call.1} parent=27 // pred_fallthru
          _
        // Predicated region
        $region49: #{tpu_custom_call.1} parent=27 // pred_check
          %p549 = pneg %p241
        $region50: #{tpu_custom_call.1} parent=27 // pred_check_branch
          %551 = sbr.rel (%p549) target = $region52
        $region51: #{tpu_custom_call.1} parent=27 // pred_region
          %p552 = scmp.lt.s32.totalorder %s28, 1
          %s553 = scalar_select %p552, %s28, 1
          %s554 = scalar_lea.vmem %s8, %s553
        $region52: #{tpu_custom_call.1} parent=27 // pred_fallthru
          _
        // Predicated region
        $region53: #{tpu_custom_call.1} parent=27 // pred_check
          %p555 = pneg %p267
        $region54: #{tpu_custom_call.1} parent=27 // pred_check_branch
          %557 = sbr.rel (%p555) target = $region56
        $region55: #{tpu_custom_call.1} parent=27 // pred_region
          %p558 = scmp.lt.s32.totalorder %s28, 1
          %s559 = scalar_select %p558, %s28, 1
          %s560 = scalar_lea.vmem %s9, %s559
        $region56: #{tpu_custom_call.1} parent=27 // pred_fallthru
          _
        // Predicated region
        $region57: #{tpu_custom_call.1} parent=27 // pred_check
          %p561 = pneg %p293
        $region58: #{tpu_custom_call.1} parent=27 // pred_check_branch
          %563 = sbr.rel (%p561) target = $region60
        $region59: #{tpu_custom_call.1} parent=27 // pred_region
          %p564 = scmp.lt.s32.totalorder %s28, 1
          %s565 = scalar_select %p564, %s28, 1
          %s566 = smul.addr %s565, 4
          %s567 = smul.addr %s566, 8
          %s568 = scalar_lea.vmem %s10, %s567
        $region60: #{tpu_custom_call.1} parent=27 // pred_fallthru
          _
        // Predicated region
        $region61: #{tpu_custom_call.1} parent=27 // pred_check
          %p569 = pneg %p319
        $region62: #{tpu_custom_call.1} parent=27 // pred_check_branch
          %571 = sbr.rel (%p569) target = $region64
        $region63: #{tpu_custom_call.1} parent=27 // pred_region
          %s572 = sand.u32 %s28, 1
          %s573 = scalar_lea.sflag [#allocation9], %s572
          %s574 = sand.u32 %s309, 1
          %s575 = scalar_lea.vmem [#allocation8], %s574
          %577 = vsyncadd %s573, 0
          %s578 = scalar_lea.hbm %s11, %s28
          %s580 = sshll.u32 %s578, 4
          %s581 = int_to_ptr.hbm [resolvable:$true] %s580
          %s582 = sshll.u32 %s575, 4
          %s583 = int_to_ptr.vmem [resolvable:$true] %s582
          %585 = dma.hbm_to_vmem [thread:$0]  %s581, 16, %s583, %s573
        $region64: #{tpu_custom_call.1} parent=27 // pred_fallthru
          _
        // Predicated region
        $region65: #{tpu_custom_call.1} parent=27 // pred_check
          %p586 = pneg %p345
        $region66: #{tpu_custom_call.1} parent=27 // pred_check_branch
          %588 = sbr.rel (%p586) target = $region68
        $region67: #{tpu_custom_call.1} parent=27 // pred_region
          %p589 = scmp.lt.s32.totalorder %s28, 1
          %s590 = scalar_select %p589, %s28, 1
          %s591 = smul.addr %s590, 16
          %s592 = smul.addr %s591, 8
          %s593 = scalar_lea.vmem %s12, %s592
        $region68: #{tpu_custom_call.1} parent=27 // pred_fallthru
          _
        // Predicated region
        $region69: #{tpu_custom_call.1} parent=27 // pred_check
          %p594 = pneg %p371
        $region70: #{tpu_custom_call.1} parent=27 // pred_check_branch
          %596 = sbr.rel (%p594) target = $region72
        $region71: #{tpu_custom_call.1} parent=27 // pred_region
          %p597 = scmp.lt.s32.totalorder %s28, 1
          %s598 = scalar_select %p597, %s28, 1
          %s599 = scalar_lea.vmem %s13, %s598
        $region72: #{tpu_custom_call.1} parent=27 // pred_fallthru
          _
        // Predicated region
        $region73: #{tpu_custom_call.1} parent=27 // pred_check
          %p600 = pneg %p397
        $region74: #{tpu_custom_call.1} parent=27 // pred_check_branch
          %602 = sbr.rel (%p600) target = $region76
        $region75: #{tpu_custom_call.1} parent=27 // pred_region
          %p603 = scmp.lt.s32.totalorder %s28, 1
          %s604 = scalar_select %p603, %s28, 1
          %s605 = scalar_lea.vmem %s14, %s604
        $region76: #{tpu_custom_call.1} parent=27 // pred_fallthru
          _
        // Predicated region
        $region77: #{tpu_custom_call.1} parent=27 // pred_check
          %p606 = pneg %p423
        $region78: #{tpu_custom_call.1} parent=27 // pred_check_branch
          %608 = sbr.rel (%p606) target = $region80
        $region79: #{tpu_custom_call.1} parent=27 // pred_region
          %s609 = sand.u32 %s28, 1
          %s610 = scalar_lea.sflag [#allocation9], %s609
          %s611 = sand.u32 %s413, 1
          %s612 = scalar_lea.vmem [#allocation10], %s611
          %614 = vsyncadd %s610, 0
          %s615 = scalar_lea.hbm %s15, %s28
          %s617 = sshll.u32 %s615, 4
          %s618 = int_to_ptr.hbm [resolvable:$true] %s617
          %s619 = sshll.u32 %s612, 4
          %s620 = int_to_ptr.vmem [resolvable:$true] %s619
          %622 = dma.hbm_to_vmem [thread:$0]  %s618, 16, %s620, %s610
        $region80: #{tpu_custom_call.1} parent=27 // pred_fallthru
          _
      $region28: #{tpu_custom_call.1} parent=5 // pred_fallthru
        _
      %p623 = scmp.le.s32.totalorder 1, %s28
      %p624 = scmp.lt.s32.totalorder %s28, 3
      %p625 = pnand %p623, %p624
      %p626 = pneg %p625
      // Predicated region
      $region81: #{tpu_custom_call.1} parent=5 // pred_check
        _
      $region82: #{tpu_custom_call.1} parent=5 // pred_check_branch
        %628 = sbr.rel (%p625) target = $region84
      $region83: #{tpu_custom_call.1} parent=5 // pred_region
        %s629 = ssub.s32 %s28, 1
        // Predicated region
        $region85: #{tpu_custom_call.1} parent=83 // pred_check
          %p630 = pneg %p49
        $region86: #{tpu_custom_call.1} parent=83 // pred_check_branch
          %632 = sbr.rel (%p630) target = $region88
        $region87: #{tpu_custom_call.1} parent=83 // pred_region
          %634 = dma.done [#allocation3], 256
        $region88: #{tpu_custom_call.1} parent=83 // pred_fallthru
          _
        // Predicated region
        $region89: #{tpu_custom_call.1} parent=83 // pred_check
          %p635 = pneg %p70
        $region90: #{tpu_custom_call.1} parent=83 // pred_check_branch
          %637 = sbr.rel (%p635) target = $region92
        $region91: #{tpu_custom_call.1} parent=83 // pred_region
          %639 = dma.done [#allocation6], 256
        $region92: #{tpu_custom_call.1} parent=83 // pred_fallthru
          _
        // Predicated region
        $region93: #{tpu_custom_call.1} parent=83 // pred_check
          %p640 = pneg %p91
        $region94: #{tpu_custom_call.1} parent=83 // pred_check_branch
          %642 = sbr.rel (%p640) target = $region96
        $region95: #{tpu_custom_call.1} parent=83 // pred_region
          %644 = dma.done [#allocation6], 256
        $region96: #{tpu_custom_call.1} parent=83 // pred_fallthru
          _
        %s645 = sand.u32 %s33, 1
        %s646 = scalar_lea.sflag [#allocation9], %s645
        %s647 = sand.u32 %s312, 1
        %s648 = scalar_lea.vmem [#allocation8], %s647
        // Predicated region
        $region97: #{tpu_custom_call.1} parent=83 // pred_check
          %p649 = pneg %p325
        $region98: #{tpu_custom_call.1} parent=83 // pred_check_branch
          %651 = sbr.rel (%p649) target = $region100
        $region99: #{tpu_custom_call.1} parent=83 // pred_region
          %653 = dma.done %s646, 16
        $region100: #{tpu_custom_call.1} parent=83 // pred_fallthru
          _
        %s654 = sand.u32 %s33, 1
        %s655 = scalar_lea.sflag [#allocation9], %s654
        %s656 = sand.u32 %s416, 1
        %s657 = scalar_lea.vmem [#allocation10], %s656
        // Predicated region
        $region101: #{tpu_custom_call.1} parent=83 // pred_check
          %p658 = pneg %p429
        $region102: #{tpu_custom_call.1} parent=83 // pred_check_branch
          %660 = sbr.rel (%p658) target = $region104
        $region103: #{tpu_custom_call.1} parent=83 // pred_region
          %662 = dma.done %s655, 16
        $region104: #{tpu_custom_call.1} parent=83 // pred_fallthru
          _
        %p663 = pneg %p49
        %p664 = pneg %p46
        %p665 = pneg %p70
        %p666 = pneg %p67
        %p667 = pneg %p91
        %p668 = pneg %p88
        %p669 = scmp.lt.s32.totalorder %s33, 1
        %s670 = scalar_select %p669, %s33, 1
        %s671 = smul.addr %s670, 4
        %s672 = smul.addr %s671, 8
        %s673 = scalar_lea.vmem %s3, %s672
        %p674 = pneg %p117
        %p675 = pneg %p114
        %p676 = scmp.lt.s32.totalorder %s33, 1
        %s677 = scalar_select %p676, %s33, 1
        %s678 = smul.addr %s677, 4
        %s679 = smul.addr %s678, 8
        %s680 = scalar_lea.vmem %s4, %s679
        %p681 = pneg %p143
        %p682 = pneg %p140
        %p683 = scmp.lt.s32.totalorder %s33, 1
        %s684 = scalar_select %p683, %s33, 1
        %s685 = smul.addr %s684, 4
        %s686 = smul.addr %s685, 8
        %s687 = scalar_lea.vmem %s5, %s686
        %p688 = pneg %p169
        %p689 = pneg %p166
        %p690 = scmp.lt.s32.totalorder %s33, 1
        %s691 = scalar_select %p690, %s33, 1
        %s692 = smul.addr %s691, 4
        %s693 = smul.addr %s692, 8
        %s694 = scalar_lea.vmem %s6, %s693
        %p695 = pneg %p195
        %p696 = pneg %p192
        %p697 = scmp.lt.s32.totalorder %s33, 1
        %s698 = scalar_select %p697, %s33, 1
        %s699 = scalar_lea.vmem %s7, %s698
        %p700 = pneg %p221
        %p701 = pneg %p218
        %p702 = scmp.lt.s32.totalorder %s33, 1
        %s703 = scalar_select %p702, %s33, 1
        %s704 = scalar_lea.vmem %s8, %s703
        %p705 = pneg %p247
        %p706 = pneg %p244
        %p707 = scmp.lt.s32.totalorder %s33, 1
        %s708 = scalar_select %p707, %s33, 1
        %s709 = scalar_lea.vmem %s9, %s708
        %p710 = pneg %p273
        %p711 = pneg %p270
        %p712 = scmp.lt.s32.totalorder %s33, 1
        %s713 = scalar_select %p712, %s33, 1
        %s714 = smul.addr %s713, 4
        %s715 = smul.addr %s714, 8
        %s716 = scalar_lea.vmem %s10, %s715
        %p717 = pneg %p299
        %p718 = pneg %p296
        %s719 = sand.u32 %s33, 1
        %s720 = scalar_lea.sflag [#allocation9], %s719
        %s721 = sand.u32 %s312, 1
        %s722 = scalar_lea.vmem [#allocation8], %s721
        %p723 = pneg %p325
        %p724 = pneg %p322
        %p725 = scmp.lt.s32.totalorder %s33, 1
        %s726 = scalar_select %p725, %s33, 1
        %s727 = smul.addr %s726, 16
        %s728 = smul.addr %s727, 8
        %s729 = scalar_lea.vmem %s12, %s728
        %p730 = pneg %p351
        %p731 = pneg %p348
        %p732 = scmp.lt.s32.totalorder %s33, 1
        %s733 = scalar_select %p732, %s33, 1
        %s734 = scalar_lea.vmem %s13, %s733
        %p735 = pneg %p377
        %p736 = pneg %p374
        %p737 = scmp.lt.s32.totalorder %s33, 1
        %s738 = scalar_select %p737, %s33, 1
        %s739 = scalar_lea.vmem %s14, %s738
        %p740 = pneg %p403
        %p741 = pneg %p400
        %s742 = sand.u32 %s33, 1
        %s743 = scalar_lea.sflag [#allocation9], %s742
        %s744 = sand.u32 %s416, 1
        %s745 = scalar_lea.vmem [#allocation10], %s744
        %p746 = pneg %p429
        %p747 = pneg %p426
        %p748 = pneg %p450
        %p749 = pneg %p447
        %p750 = scmp.lt.s32.totalorder %s33, 1
        %s751 = scalar_select %p750, %s33, 1
        %s752 = smul.addr %s751, 4
        %s753 = smul.addr %s752, 8
        %s754 = scalar_lea.vmem %s3, %s753
        %p755 = scmp.lt.s32.totalorder %s33, 1
        %s756 = scalar_select %p755, %s33, 1
        %s757 = smul.addr %s756, 4
        %s758 = smul.addr %s757, 8
        %s759 = scalar_lea.vmem %s4, %s758
        %p760 = scmp.lt.s32.totalorder %s33, 1
        %s761 = scalar_select %p760, %s33, 1
        %s762 = smul.addr %s761, 4
        %s763 = smul.addr %s762, 8
        %s764 = scalar_lea.vmem %s5, %s763
        %p765 = scmp.lt.s32.totalorder %s33, 1
        %s766 = scalar_select %p765, %s33, 1
        %s767 = smul.addr %s766, 4
        %s768 = smul.addr %s767, 8
        %s769 = scalar_lea.vmem %s6, %s768
        %p770 = scmp.lt.s32.totalorder %s33, 1
        %s771 = scalar_select %p770, %s33, 1
        %s772 = scalar_lea.vmem %s7, %s771
        %p773 = scmp.lt.s32.totalorder %s33, 1
        %s774 = scalar_select %p773, %s33, 1
        %s775 = scalar_lea.vmem %s8, %s774
        %p776 = scmp.lt.s32.totalorder %s33, 1
        %s777 = scalar_select %p776, %s33, 1
        %s778 = scalar_lea.vmem %s9, %s777
        %p779 = scmp.lt.s32.totalorder %s33, 1
        %s780 = scalar_select %p779, %s33, 1
        %s781 = smul.addr %s780, 4
        %s782 = smul.addr %s781, 8
        %s783 = scalar_lea.vmem %s10, %s782
        %p784 = scmp.lt.s32.totalorder %s33, 1
        %s785 = scalar_select %p784, %s33, 1
        %s786 = smul.addr %s785, 16
        %s787 = smul.addr %s786, 8
        %s788 = scalar_lea.vmem %s12, %s787
        %p789 = scmp.lt.s32.totalorder %s33, 1
        %s790 = scalar_select %p789, %s33, 1
        %s791 = scalar_lea.vmem %s13, %s790
        %p792 = scmp.lt.s32.totalorder %s33, 1
        %s793 = scalar_select %p792, %s33, 1
        %s794 = scalar_lea.vmem %s14, %s793
        %p795 = scmp.eq.s32.totalorder %s33, 0
        // Predicated region
        $region105: #{tpu_custom_call.1} parent=83 // pred_check
          %p796 = pneg %p795
        $region106: #{tpu_custom_call.1} parent=83 // pred_check_branch
          %798 = sbr.rel (%p796) target = $region108
        $region107: #{tpu_custom_call.1} parent=83 // pred_region
          %v799 = vld [vmem:[#allocation2] sm:$0xff]
          %v800 = vld [vmem:[#allocation2 + $0x8] sm:$0xff]
          %v801 = vld [vmem:[#allocation5] sm:$0xff]
          %v802 = vld [vmem:[#allocation5 + $0x8] sm:$0xff]
          %v803 = vadd.f32 %v799, %v801
          %v804 = vadd.f32 %v800, %v802
          %vm805 = vcmask 261120
          %806 = vst.msk [vmem:[#allocation11] sm:$0xff] %vm805, %v803
          %807 = vst.msk [vmem:[#allocation11 + $0x8] sm:$0xff] %vm805, %v804
        $region108: #{tpu_custom_call.1} parent=83 // pred_fallthru
          _
        %v808 = vld [vmem:[#allocation11] sm:$0xff]
        %v809 = vld [vmem:[#allocation11 + $0x8] sm:$0xff]
        %v810 = vld [vmem:[%s754] sm:$0xff]
        %v811 = vld [vmem:[%s754 + $0x8] sm:$0xff]
        %v812 = vld [vmem:[%s754 + $0x10] sm:$0xff]
        %v813 = vld [vmem:[%s754 + $0x18] sm:$0xff]
        %vm814 = vcmask 261120
        %v816 = vsel %vm814, %v808, 0
        %v819 = vsel %vm814, %v809, 0
        %821 = vmatpush.msra.mxu0 0.0
        %822 = vmatpush.msra.mxu0 0.0
        %823 = vmatpush.msra.mxu0 0.0
        %824 = vmatpush.msra.mxu0 0.0
        %825 = vmatpush.msra.mxu0 0.0
        %826 = vmatpush.msra.mxu0 0.0
        %827 = vmatpush.msra.mxu0 0.0
        %828 = vmatpush.msra.mxu0 0.0
        %829 = vmatpush.msra.mxu0 0.0
        %830 = vmatpush.msra.mxu0 0.0
        %831 = vmatpush.msra.mxu0 0.0
        %832 = vmatpush.msra.mxu0 0.0
        %833 = vmatpush.msra.mxu0 %v813
        %834 = vmatpush.msra.mxu0 %v812
        %835 = vmatpush.msra.mxu0 %v811
        %836 = vmatpush.msra.mxu0 %v810
        %837 = vmatmul.f32.gmra.mxu0 %v816
        %v838 = vpop.f32.mrf.mxu0
        %v839 = vadd.f32 0.0, %v838
        %840 = vmatmul.f32.gmra.mxu0 %v819
        %v841 = vpop.f32.mrf.mxu0
        %v842 = vadd.f32 0.0, %v841
        %843 = vdwg.mxu0
        %v844 = vld [vmem:[%s759] sm:$0xff]
        %v845 = vld [vmem:[%s759 + $0x8] sm:$0xff]
        %v846 = vld [vmem:[%s759 + $0x10] sm:$0xff]
        %v847 = vld [vmem:[%s759 + $0x18] sm:$0xff]
        %848 = vmatpush.msra.mxu0 0.0
        %849 = vmatpush.msra.mxu0 0.0
        %850 = vmatpush.msra.mxu0 0.0
        %851 = vmatpush.msra.mxu0 0.0
        %852 = vmatpush.msra.mxu0 0.0
        %853 = vmatpush.msra.mxu0 0.0
        %854 = vmatpush.msra.mxu0 0.0
        %855 = vmatpush.msra.mxu0 0.0
        %856 = vmatpush.msra.mxu0 0.0
        %857 = vmatpush.msra.mxu0 0.0
        %858 = vmatpush.msra.mxu0 0.0
        %859 = vmatpush.msra.mxu0 0.0
        %860 = vmatpush.msra.mxu0 %v847
        %861 = vmatpush.msra.mxu0 %v846
        %862 = vmatpush.msra.mxu0 %v845
        %863 = vmatpush.msra.mxu0 %v844
        %864 = vmatmul.f32.gmra.mxu0 %v816
        %v865 = vpop.f32.mrf.mxu0
        %v866 = vadd.f32 0.0, %v865
        %867 = vmatmul.f32.gmra.mxu0 %v819
        %v868 = vpop.f32.mrf.mxu0
        %v869 = vadd.f32 0.0, %v868
        %870 = vdwg.mxu0
        %v871 = vld [vmem:[%s764] sm:$0xff]
        %v872 = vld [vmem:[%s764 + $0x8] sm:$0xff]
        %v873 = vld [vmem:[%s764 + $0x10] sm:$0xff]
        %v874 = vld [vmem:[%s764 + $0x18] sm:$0xff]
        %875 = vmatpush.msra.mxu0 0.0
        %876 = vmatpush.msra.mxu0 0.0
        %877 = vmatpush.msra.mxu0 0.0
        %878 = vmatpush.msra.mxu0 0.0
        %879 = vmatpush.msra.mxu0 0.0
        %880 = vmatpush.msra.mxu0 0.0
        %881 = vmatpush.msra.mxu0 0.0
        %882 = vmatpush.msra.mxu0 0.0
        %883 = vmatpush.msra.mxu0 0.0
        %884 = vmatpush.msra.mxu0 0.0
        %885 = vmatpush.msra.mxu0 0.0
        %886 = vmatpush.msra.mxu0 0.0
        %887 = vmatpush.msra.mxu0 %v874
        %888 = vmatpush.msra.mxu0 %v873
        %889 = vmatpush.msra.mxu0 %v872
        %890 = vmatpush.msra.mxu0 %v871
        %891 = vmatmul.f32.gmra.mxu0 %v816
        %v892 = vpop.f32.mrf.mxu0
        %v893 = vadd.f32 0.0, %v892
        %894 = vmatmul.f32.gmra.mxu0 %v819
        %v895 = vpop.f32.mrf.mxu0
        %v896 = vadd.f32 0.0, %v895
        %897 = vdwg.mxu0
        %v898 = vld [vmem:[#allocation7] sm:$0xff]
        %vm899 = vcmask 64512
        %v901 = vsel %vm899, %v839, 0
        %v904 = vsel %vm899, %v866, 0
        %906 = vmatpush.xpose.msra.mxu0 0.0
        %907 = vmatpush.xpose.msra.mxu0 0.0
        %908 = vmatpush.xpose.msra.mxu0 0.0
        %909 = vmatpush.xpose.msra.mxu0 0.0
        %910 = vmatpush.xpose.msra.mxu0 0.0
        %911 = vmatpush.xpose.msra.mxu0 0.0
        %912 = vmatpush.xpose.msra.mxu0 0.0
        %913 = vmatpush.xpose.msra.mxu0 0.0
        %914 = vmatpush.xpose.msra.mxu0 0.0
        %915 = vmatpush.xpose.msra.mxu0 0.0
        %916 = vmatpush.xpose.msra.mxu0 0.0
        %917 = vmatpush.xpose.msra.mxu0 0.0
        %918 = vmatpush.xpose.msra.mxu0 0.0
        %919 = vmatpush.xpose.msra.mxu0 0.0
        %920 = vmatpush.xpose.msra.mxu0 0.0
        %921 = vmatpush.xpose.msra.mxu0 %v904
        %922 = vmatmul.f32.gmra.mxu0 %v901
        %v923 = vpop.f32.mrf.mxu0
        %v924 = vadd.f32 0.0, %v923
        %925 = vdwg.mxu0
        %vm926 = vcmp.eq.f32.partialorder %v898, 0.0
        %v927 = vsel %vm926, -1e+20, %v924
        %v928 = vmul.f32 %v927, 0.17677669
        %v929 = vsel %vm899, %v928, -inf
        %930 = vmax.xlane.f32.xlu0 %v929
        %v931 = vpop.xlane.xlu0 %930
        %v932 = vsub.f32 %v928, %v931
        %v933 = vmul.f32 %v932, 1.442695
        %v934 = vpow.pop %v933
        %v935 = vsel %vm899, %v934, 0.0
        %936 = vadd.xlane.f32.xlu0 %v935
        %v937 = vpop.xlane.xlu0 %936
        %v938 = vrcp.pop %v937
        %v939 = vmul.f32 %v937, %v938
        %v940 = vsub.f32 1.0, %v939
        %v941 = vmul.f32 %v938, %v940
        %v942 = vadd.f32 %v938, %v941
        %vm943 = vweird.f32 %v937
        %vm944 = vweird.f32 %v938
        %vm945 = vmor %vm943, %vm944
        %v946 = vsel %vm945, %v938, %v942
        %v947 = vand.u32 2147483647, %v937
        %vm948 = vcmp.eq.f32.partialorder %v947, 8.507059e+37
        %v949 = vand.u32 %v937, 2147483648
        %v950 = vor.u32 1.1754944e-38, %v949
        %v951 = vsel %vm948, %v950, %v946
        %v952 = vmul.f32 %v934, %v951
        %v954 = vsel %vm899, %v952, 0
        %956 = vmatpush.msra.mxu0 0.0
        %957 = vmatpush.msra.mxu0 0.0
        %958 = vmatpush.msra.mxu0 0.0
        %959 = vmatpush.msra.mxu0 0.0
        %960 = vmatpush.msra.mxu0 0.0
        %961 = vmatpush.msra.mxu0 0.0
        %962 = vmatpush.msra.mxu0 0.0
        %963 = vmatpush.msra.mxu0 0.0
        %964 = vmatpush.msra.mxu0 0.0
        %965 = vmatpush.msra.mxu0 0.0
        %966 = vmatpush.msra.mxu0 0.0
        %967 = vmatpush.msra.mxu0 0.0
        %968 = vmatpush.msra.mxu0 0.0
        %969 = vmatpush.msra.mxu0 0.0
        %970 = vmatpush.msra.mxu0 0.0
        %971 = vmatpush.msra.mxu0 %v893
        %972 = vmatmul.f32.gmra.mxu0 %v954
        %v973 = vpop.f32.mrf.mxu0
        %v974 = vadd.f32 0.0, %v973
        %975 = vdwg.mxu0
        %976 = vrot.lane.b32.xlu0 %v839, 120
        %v977 = vpop.permute.xlu0 %976
        %978 = vrot.lane.b32.xlu0 %v866, 120
        %v979 = vpop.permute.xlu0 %978
        %v980 = vsel %vm899, %v977, 0
        %v982 = vsel %vm899, %v979, 0
        %984 = vmatpush.xpose.msra.mxu0 0.0
        %985 = vmatpush.xpose.msra.mxu0 0.0
        %986 = vmatpush.xpose.msra.mxu0 0.0
        %987 = vmatpush.xpose.msra.mxu0 0.0
        %988 = vmatpush.xpose.msra.mxu0 0.0
        %989 = vmatpush.xpose.msra.mxu0 0.0
        %990 = vmatpush.xpose.msra.mxu0 0.0
        %991 = vmatpush.xpose.msra.mxu0 0.0
        %992 = vmatpush.xpose.msra.mxu0 0.0
        %993 = vmatpush.xpose.msra.mxu0 0.0
        %994 = vmatpush.xpose.msra.mxu0 0.0
        %995 = vmatpush.xpose.msra.mxu0 0.0
        %996 = vmatpush.xpose.msra.mxu0 0.0
        %997 = vmatpush.xpose.msra.mxu0 0.0
        %998 = vmatpush.xpose.msra.mxu0 0.0
        %999 = vmatpush.xpose.msra.mxu0 %v982
        %1000 = vmatmul.f32.gmra.mxu0 %v980
        %v1001 = vpop.f32.mrf.mxu0
        %v1002 = vadd.f32 0.0, %v1001
        %1003 = vdwg.mxu0
        %v1004 = vsel %vm926, -1e+20, %v1002
        %v1005 = vmul.f32 %v1004, 0.17677669
        %v1006 = vsel %vm899, %v1005, -inf
        %1007 = vmax.xlane.f32.xlu0 %v1006
        %v1008 = vpop.xlane.xlu0 %1007
        %v1009 = vsub.f32 %v1005, %v1008
        %v1010 = vmul.f32 %v1009, 1.442695
        %v1011 = vpow.pop %v1010
        %v1012 = vsel %vm899, %v1011, 0.0
        %1013 = vadd.xlane.f32.xlu0 %v1012
        %v1014 = vpop.xlane.xlu0 %1013
        %v1015 = vrcp.pop %v1014
        %v1016 = vmul.f32 %v1014, %v1015
        %v1017 = vsub.f32 1.0, %v1016
        %v1018 = vmul.f32 %v1015, %v1017
        %v1019 = vadd.f32 %v1015, %v1018
        %vm1020 = vweird.f32 %v1014
        %vm1021 = vweird.f32 %v1015
        %vm1022 = vmor %vm1020, %vm1021
        %v1023 = vsel %vm1022, %v1015, %v1019
        %v1024 = vand.u32 2147483647, %v1014
        %vm1025 = vcmp.eq.f32.partialorder %v1024, 8.507059e+37
        %v1026 = vand.u32 %v1014, 2147483648
        %v1027 = vor.u32 1.1754944e-38, %v1026
        %v1028 = vsel %vm1025, %v1027, %v1023
        %v1029 = vmul.f32 %v1011, %v1028
        %1031 = vrot.lane.b32.xlu0 %v893, 120
        %v1032 = vpop.permute.xlu0 %1031
        %v1035 = vsel %vm899, %v1029, 0
        %1037 = vmatpush.msra.mxu0 0.0
        %1038 = vmatpush.msra.mxu0 0.0
        %1039 = vmatpush.msra.mxu0 0.0
        %1040 = vmatpush.msra.mxu0 0.0
        %1041 = vmatpush.msra.mxu0 0.0
        %1042 = vmatpush.msra.mxu0 0.0
        %1043 = vmatpush.msra.mxu0 0.0
        %1044 = vmatpush.msra.mxu0 0.0
        %1045 = vmatpush.msra.mxu0 0.0
        %1046 = vmatpush.msra.mxu0 0.0
        %1047 = vmatpush.msra.mxu0 0.0
        %1048 = vmatpush.msra.mxu0 0.0
        %1049 = vmatpush.msra.mxu0 0.0
        %1050 = vmatpush.msra.mxu0 0.0
        %1051 = vmatpush.msra.mxu0 0.0
        %1052 = vmatpush.msra.mxu0 %v1032
        %1053 = vmatmul.f32.gmra.mxu0 %v1035
        %v1054 = vpop.f32.mrf.mxu0
        %v1055 = vadd.f32 0.0, %v1054
        %1056 = vdwg.mxu0
        %1057 = vrot.lane.b32.xlu0 %v839, 112
        %v1058 = vpop.permute.xlu0 %1057
        %1059 = vrot.lane.b32.xlu0 %v866, 112
        %v1060 = vpop.permute.xlu0 %1059
        %v1061 = vsel %vm899, %v1058, 0
        %v1063 = vsel %vm899, %v1060, 0
        %1065 = vmatpush.xpose.msra.mxu0 0.0
        %1066 = vmatpush.xpose.msra.mxu0 0.0
        %1067 = vmatpush.xpose.msra.mxu0 0.0
        %1068 = vmatpush.xpose.msra.mxu0 0.0
        %1069 = vmatpush.xpose.msra.mxu0 0.0
        %1070 = vmatpush.xpose.msra.mxu0 0.0
        %1071 = vmatpush.xpose.msra.mxu0 0.0
        %1072 = vmatpush.xpose.msra.mxu0 0.0
        %1073 = vmatpush.xpose.msra.mxu0 0.0
        %1074 = vmatpush.xpose.msra.mxu0 0.0
        %1075 = vmatpush.xpose.msra.mxu0 0.0
        %1076 = vmatpush.xpose.msra.mxu0 0.0
        %1077 = vmatpush.xpose.msra.mxu0 0.0
        %1078 = vmatpush.xpose.msra.mxu0 0.0
        %1079 = vmatpush.xpose.msra.mxu0 0.0
        %1080 = vmatpush.xpose.msra.mxu0 %v1063
        %1081 = vmatmul.f32.gmra.mxu0 %v1061
        %v1082 = vpop.f32.mrf.mxu0
        %v1083 = vadd.f32 0.0, %v1082
        %1084 = vdwg.mxu0
        %v1085 = vsel %vm926, -1e+20, %v1083
        %v1086 = vmul.f32 %v1085, 0.17677669
        %v1087 = vsel %vm899, %v1086, -inf
        %1088 = vmax.xlane.f32.xlu0 %v1087
        %v1089 = vpop.xlane.xlu0 %1088
        %v1090 = vsub.f32 %v1086, %v1089
        %v1091 = vmul.f32 %v1090, 1.442695
        %v1092 = vpow.pop %v1091
        %v1093 = vsel %vm899, %v1092, 0.0
        %1094 = vadd.xlane.f32.xlu0 %v1093
        %v1095 = vpop.xlane.xlu0 %1094
        %v1096 = vrcp.pop %v1095
        %v1097 = vmul.f32 %v1095, %v1096
        %v1098 = vsub.f32 1.0, %v1097
        %v1099 = vmul.f32 %v1096, %v1098
        %v1100 = vadd.f32 %v1096, %v1099
        %vm1101 = vweird.f32 %v1095
        %vm1102 = vweird.f32 %v1096
        %vm1103 = vmor %vm1101, %vm1102
        %v1104 = vsel %vm1103, %v1096, %v1100
        %v1105 = vand.u32 2147483647, %v1095
        %vm1106 = vcmp.eq.f32.partialorder %v1105, 8.507059e+37
        %v1107 = vand.u32 %v1095, 2147483648
        %v1108 = vor.u32 1.1754944e-38, %v1107
        %v1109 = vsel %vm1106, %v1108, %v1104
        %v1110 = vmul.f32 %v1092, %v1109
        %1111 = vrot.lane.b32.xlu0 %v893, 112
        %v1112 = vpop.permute.xlu0 %1111
        %v1115 = vsel %vm899, %v1110, 0
        %1117 = vmatpush.msra.mxu0 0.0
        %1118 = vmatpush.msra.mxu0 0.0
        %1119 = vmatpush.msra.mxu0 0.0
        %1120 = vmatpush.msra.mxu0 0.0
        %1121 = vmatpush.msra.mxu0 0.0
        %1122 = vmatpush.msra.mxu0 0.0
        %1123 = vmatpush.msra.mxu0 0.0
        %1124 = vmatpush.msra.mxu0 0.0
        %1125 = vmatpush.msra.mxu0 0.0
        %1126 = vmatpush.msra.mxu0 0.0
        %1127 = vmatpush.msra.mxu0 0.0
        %1128 = vmatpush.msra.mxu0 0.0
        %1129 = vmatpush.msra.mxu0 0.0
        %1130 = vmatpush.msra.mxu0 0.0
        %1131 = vmatpush.msra.mxu0 0.0
        %1132 = vmatpush.msra.mxu0 %v1112
        %1133 = vmatmul.f32.gmra.mxu0 %v1115
        %v1134 = vpop.f32.mrf.mxu0
        %v1135 = vadd.f32 0.0, %v1134
        %1136 = vdwg.mxu0
        %1137 = vrot.lane.b32.xlu0 %v839, 104
        %v1138 = vpop.permute.xlu0 %1137
        %1139 = vrot.lane.b32.xlu0 %v866, 104
        %v1140 = vpop.permute.xlu0 %1139
        %v1141 = vsel %vm899, %v1138, 0
        %v1143 = vsel %vm899, %v1140, 0
        %1145 = vmatpush.xpose.msra.mxu0 0.0
        %1146 = vmatpush.xpose.msra.mxu0 0.0
        %1147 = vmatpush.xpose.msra.mxu0 0.0
        %1148 = vmatpush.xpose.msra.mxu0 0.0
        %1149 = vmatpush.xpose.msra.mxu0 0.0
        %1150 = vmatpush.xpose.msra.mxu0 0.0
        %1151 = vmatpush.xpose.msra.mxu0 0.0
        %1152 = vmatpush.xpose.msra.mxu0 0.0
        %1153 = vmatpush.xpose.msra.mxu0 0.0
        %1154 = vmatpush.xpose.msra.mxu0 0.0
        %1155 = vmatpush.xpose.msra.mxu0 0.0
        %1156 = vmatpush.xpose.msra.mxu0 0.0
        %1157 = vmatpush.xpose.msra.mxu0 0.0
        %1158 = vmatpush.xpose.msra.mxu0 0.0
        %1159 = vmatpush.xpose.msra.mxu0 0.0
        %1160 = vmatpush.xpose.msra.mxu0 %v1143
        %1161 = vmatmul.f32.gmra.mxu0 %v1141
        %v1162 = vpop.f32.mrf.mxu0
        %v1163 = vadd.f32 0.0, %v1162
        %1164 = vdwg.mxu0
        %v1165 = vsel %vm926, -1e+20, %v1163
        %v1166 = vmul.f32 %v1165, 0.17677669
        %v1167 = vsel %vm899, %v1166, -inf
        %1168 = vmax.xlane.f32.xlu0 %v1167
        %v1169 = vpop.xlane.xlu0 %1168
        %v1170 = vsub.f32 %v1166, %v1169
        %v1171 = vmul.f32 %v1170, 1.442695
        %v1172 = vpow.pop %v1171
        %v1173 = vsel %vm899, %v1172, 0.0
        %1174 = vadd.xlane.f32.xlu0 %v1173
        %v1175 = vpop.xlane.xlu0 %1174
        %v1176 = vrcp.pop %v1175
        %v1177 = vmul.f32 %v1175, %v1176
        %v1178 = vsub.f32 1.0, %v1177
        %v1179 = vmul.f32 %v1176, %v1178
        %v1180 = vadd.f32 %v1176, %v1179
        %vm1181 = vweird.f32 %v1175
        %vm1182 = vweird.f32 %v1176
        %vm1183 = vmor %vm1181, %vm1182
        %v1184 = vsel %vm1183, %v1176, %v1180
        %v1185 = vand.u32 2147483647, %v1175
        %vm1186 = vcmp.eq.f32.partialorder %v1185, 8.507059e+37
        %v1187 = vand.u32 %v1175, 2147483648
        %v1188 = vor.u32 1.1754944e-38, %v1187
        %v1189 = vsel %vm1186, %v1188, %v1184
        %v1190 = vmul.f32 %v1172, %v1189
        %1191 = vrot.lane.b32.xlu0 %v893, 104
        %v1192 = vpop.permute.xlu0 %1191
        %v1195 = vsel %vm899, %v1190, 0
        %1197 = vmatpush.msra.mxu0 0.0
        %1198 = vmatpush.msra.mxu0 0.0
        %1199 = vmatpush.msra.mxu0 0.0
        %1200 = vmatpush.msra.mxu0 0.0
        %1201 = vmatpush.msra.mxu0 0.0
        %1202 = vmatpush.msra.mxu0 0.0
        %1203 = vmatpush.msra.mxu0 0.0
        %1204 = vmatpush.msra.mxu0 0.0
        %1205 = vmatpush.msra.mxu0 0.0
        %1206 = vmatpush.msra.mxu0 0.0
        %1207 = vmatpush.msra.mxu0 0.0
        %1208 = vmatpush.msra.mxu0 0.0
        %1209 = vmatpush.msra.mxu0 0.0
        %1210 = vmatpush.msra.mxu0 0.0
        %1211 = vmatpush.msra.mxu0 0.0
        %1212 = vmatpush.msra.mxu0 %v1192
        %1213 = vmatmul.f32.gmra.mxu0 %v1195
        %v1214 = vpop.f32.mrf.mxu0
        %v1215 = vadd.f32 0.0, %v1214
        %1216 = vdwg.mxu0
        %1218 = vrot.lane.b32.xlu0 %v1055, 8
        %v1219 = vpop.permute.xlu0 %1218
        %1222 = vrot.lane.b32.xlu0 %v1135, 16
        %v1223 = vpop.permute.xlu0 %1222
        %1226 = vrot.lane.b32.xlu0 %v1215, 24
        %v1227 = vpop.permute.xlu0 %1226
        %v1229 = vsel %vm899, %v974, %v1219
        %vm1230 = vcmask 130048
        %v1231 = vsel %vm1230, %v1229, %v1223
        %vm1232 = vcmask 195584
        %v1233 = vsel %vm1232, %v1231, %v1227
        %s1234 = scalar_lea.vmem [#allocation7], 8
        %v1235 = vld [vmem:[%s1234] sm:$0xff]
        %v1237 = vsel %vm899, %v842, 0
        %v1240 = vsel %vm899, %v869, 0
        %1242 = vmatpush.xpose.msra.mxu0 0.0
        %1243 = vmatpush.xpose.msra.mxu0 0.0
        %1244 = vmatpush.xpose.msra.mxu0 0.0
        %1245 = vmatpush.xpose.msra.mxu0 0.0
        %1246 = vmatpush.xpose.msra.mxu0 0.0
        %1247 = vmatpush.xpose.msra.mxu0 0.0
        %1248 = vmatpush.xpose.msra.mxu0 0.0
        %1249 = vmatpush.xpose.msra.mxu0 0.0
        %1250 = vmatpush.xpose.msra.mxu0 0.0
        %1251 = vmatpush.xpose.msra.mxu0 0.0
        %1252 = vmatpush.xpose.msra.mxu0 0.0
        %1253 = vmatpush.xpose.msra.mxu0 0.0
        %1254 = vmatpush.xpose.msra.mxu0 0.0
        %1255 = vmatpush.xpose.msra.mxu0 0.0
        %1256 = vmatpush.xpose.msra.mxu0 0.0
        %1257 = vmatpush.xpose.msra.mxu0 %v1240
        %1258 = vmatmul.f32.gmra.mxu0 %v1237
        %v1259 = vpop.f32.mrf.mxu0
        %v1260 = vadd.f32 0.0, %v1259
        %1261 = vdwg.mxu0
        %vm1262 = vcmp.eq.f32.partialorder %v1235, 0.0
        %v1263 = vsel %vm1262, -1e+20, %v1260
        %v1264 = vmul.f32 %v1263, 0.17677669
        %v1265 = vsel %vm899, %v1264, -inf
        %1266 = vmax.xlane.f32.xlu0 %v1265
        %v1267 = vpop.xlane.xlu0 %1266
        %v1268 = vsub.f32 %v1264, %v1267
        %v1269 = vmul.f32 %v1268, 1.442695
        %v1270 = vpow.pop %v1269
        %v1271 = vsel %vm899, %v1270, 0.0
        %1272 = vadd.xlane.f32.xlu0 %v1271
        %v1273 = vpop.xlane.xlu0 %1272
        %v1274 = vrcp.pop %v1273
        %v1275 = vmul.f32 %v1273, %v1274
        %v1276 = vsub.f32 1.0, %v1275
        %v1277 = vmul.f32 %v1274, %v1276
        %v1278 = vadd.f32 %v1274, %v1277
        %vm1279 = vweird.f32 %v1273
        %vm1280 = vweird.f32 %v1274
        %vm1281 = vmor %vm1279, %vm1280
        %v1282 = vsel %vm1281, %v1274, %v1278
        %v1283 = vand.u32 2147483647, %v1273
        %vm1284 = vcmp.eq.f32.partialorder %v1283, 8.507059e+37
        %v1285 = vand.u32 %v1273, 2147483648
        %v1286 = vor.u32 1.1754944e-38, %v1285
        %v1287 = vsel %vm1284, %v1286, %v1282
        %v1288 = vmul.f32 %v1270, %v1287
        %v1290 = vsel %vm899, %v1288, 0
        %1292 = vmatpush.msra.mxu0 0.0
        %1293 = vmatpush.msra.mxu0 0.0
        %1294 = vmatpush.msra.mxu0 0.0
        %1295 = vmatpush.msra.mxu0 0.0
        %1296 = vmatpush.msra.mxu0 0.0
        %1297 = vmatpush.msra.mxu0 0.0
        %1298 = vmatpush.msra.mxu0 0.0
        %1299 = vmatpush.msra.mxu0 0.0
        %1300 = vmatpush.msra.mxu0 0.0
        %1301 = vmatpush.msra.mxu0 0.0
        %1302 = vmatpush.msra.mxu0 0.0
        %1303 = vmatpush.msra.mxu0 0.0
        %1304 = vmatpush.msra.mxu0 0.0
        %1305 = vmatpush.msra.mxu0 0.0
        %1306 = vmatpush.msra.mxu0 0.0
        %1307 = vmatpush.msra.mxu0 %v896
        %1308 = vmatmul.f32.gmra.mxu0 %v1290
        %v1309 = vpop.f32.mrf.mxu0
        %v1310 = vadd.f32 0.0, %v1309
        %1311 = vdwg.mxu0
        %1312 = vrot.lane.b32.xlu0 %v842, 120
        %v1313 = vpop.permute.xlu0 %1312
        %1314 = vrot.lane.b32.xlu0 %v869, 120
        %v1315 = vpop.permute.xlu0 %1314
        %v1316 = vsel %vm899, %v1313, 0
        %v1318 = vsel %vm899, %v1315, 0
        %1320 = vmatpush.xpose.msra.mxu0 0.0
        %1321 = vmatpush.xpose.msra.mxu0 0.0
        %1322 = vmatpush.xpose.msra.mxu0 0.0
        %1323 = vmatpush.xpose.msra.mxu0 0.0
        %1324 = vmatpush.xpose.msra.mxu0 0.0
        %1325 = vmatpush.xpose.msra.mxu0 0.0
        %1326 = vmatpush.xpose.msra.mxu0 0.0
        %1327 = vmatpush.xpose.msra.mxu0 0.0
        %1328 = vmatpush.xpose.msra.mxu0 0.0
        %1329 = vmatpush.xpose.msra.mxu0 0.0
        %1330 = vmatpush.xpose.msra.mxu0 0.0
        %1331 = vmatpush.xpose.msra.mxu0 0.0
        %1332 = vmatpush.xpose.msra.mxu0 0.0
        %1333 = vmatpush.xpose.msra.mxu0 0.0
        %1334 = vmatpush.xpose.msra.mxu0 0.0
        %1335 = vmatpush.xpose.msra.mxu0 %v1318
        %1336 = vmatmul.f32.gmra.mxu0 %v1316
        %v1337 = vpop.f32.mrf.mxu0
        %v1338 = vadd.f32 0.0, %v1337
        %1339 = vdwg.mxu0
        %v1340 = vsel %vm1262, -1e+20, %v1338
        %v1341 = vmul.f32 %v1340, 0.17677669
        %v1342 = vsel %vm899, %v1341, -inf
        %1343 = vmax.xlane.f32.xlu0 %v1342
        %v1344 = vpop.xlane.xlu0 %1343
        %v1345 = vsub.f32 %v1341, %v1344
        %v1346 = vmul.f32 %v1345, 1.442695
        %v1347 = vpow.pop %v1346
        %v1348 = vsel %vm899, %v1347, 0.0
        %1349 = vadd.xlane.f32.xlu0 %v1348
        %v1350 = vpop.xlane.xlu0 %1349
        %v1351 = vrcp.pop %v1350
        %v1352 = vmul.f32 %v1350, %v1351
        %v1353 = vsub.f32 1.0, %v1352
        %v1354 = vmul.f32 %v1351, %v1353
        %v1355 = vadd.f32 %v1351, %v1354
        %vm1356 = vweird.f32 %v1350
        %vm1357 = vweird.f32 %v1351
        %vm1358 = vmor %vm1356, %vm1357
        %v1359 = vsel %vm1358, %v1351, %v1355
        %v1360 = vand.u32 2147483647, %v1350
        %vm1361 = vcmp.eq.f32.partialorder %v1360, 8.507059e+37
        %v1362 = vand.u32 %v1350, 2147483648
        %v1363 = vor.u32 1.1754944e-38, %v1362
        %v1364 = vsel %vm1361, %v1363, %v1359
        %v1365 = vmul.f32 %v1347, %v1364
        %1367 = vrot.lane.b32.xlu0 %v896, 120
        %v1368 = vpop.permute.xlu0 %1367
        %v1371 = vsel %vm899, %v1365, 0
        %1373 = vmatpush.msra.mxu0 0.0
        %1374 = vmatpush.msra.mxu0 0.0
        %1375 = vmatpush.msra.mxu0 0.0
        %1376 = vmatpush.msra.mxu0 0.0
        %1377 = vmatpush.msra.mxu0 0.0
        %1378 = vmatpush.msra.mxu0 0.0
        %1379 = vmatpush.msra.mxu0 0.0
        %1380 = vmatpush.msra.mxu0 0.0
        %1381 = vmatpush.msra.mxu0 0.0
        %1382 = vmatpush.msra.mxu0 0.0
        %1383 = vmatpush.msra.mxu0 0.0
        %1384 = vmatpush.msra.mxu0 0.0
        %1385 = vmatpush.msra.mxu0 0.0
        %1386 = vmatpush.msra.mxu0 0.0
        %1387 = vmatpush.msra.mxu0 0.0
        %1388 = vmatpush.msra.mxu0 %v1368
        %1389 = vmatmul.f32.gmra.mxu0 %v1371
        %v1390 = vpop.f32.mrf.mxu0
        %v1391 = vadd.f32 0.0, %v1390
        %1392 = vdwg.mxu0
        %1393 = vrot.lane.b32.xlu0 %v842, 112
        %v1394 = vpop.permute.xlu0 %1393
        %1395 = vrot.lane.b32.xlu0 %v869, 112
        %v1396 = vpop.permute.xlu0 %1395
        %v1397 = vsel %vm899, %v1394, 0
        %v1399 = vsel %vm899, %v1396, 0
        %1401 = vmatpush.xpose.msra.mxu0 0.0
        %1402 = vmatpush.xpose.msra.mxu0 0.0
        %1403 = vmatpush.xpose.msra.mxu0 0.0
        %1404 = vmatpush.xpose.msra.mxu0 0.0
        %1405 = vmatpush.xpose.msra.mxu0 0.0
        %1406 = vmatpush.xpose.msra.mxu0 0.0
        %1407 = vmatpush.xpose.msra.mxu0 0.0
        %1408 = vmatpush.xpose.msra.mxu0 0.0
        %1409 = vmatpush.xpose.msra.mxu0 0.0
        %1410 = vmatpush.xpose.msra.mxu0 0.0
        %1411 = vmatpush.xpose.msra.mxu0 0.0
        %1412 = vmatpush.xpose.msra.mxu0 0.0
        %1413 = vmatpush.xpose.msra.mxu0 0.0
        %1414 = vmatpush.xpose.msra.mxu0 0.0
        %1415 = vmatpush.xpose.msra.mxu0 0.0
        %1416 = vmatpush.xpose.msra.mxu0 %v1399
        %1417 = vmatmul.f32.gmra.mxu0 %v1397
        %v1418 = vpop.f32.mrf.mxu0
        %v1419 = vadd.f32 0.0, %v1418
        %1420 = vdwg.mxu0
        %v1421 = vsel %vm1262, -1e+20, %v1419
        %v1422 = vmul.f32 %v1421, 0.17677669
        %v1423 = vsel %vm899, %v1422, -inf
        %1424 = vmax.xlane.f32.xlu0 %v1423
        %v1425 = vpop.xlane.xlu0 %1424
        %v1426 = vsub.f32 %v1422, %v1425
        %v1427 = vmul.f32 %v1426, 1.442695
        %v1428 = vpow.pop %v1427
        %v1429 = vsel %vm899, %v1428, 0.0
        %1430 = vadd.xlane.f32.xlu0 %v1429
        %v1431 = vpop.xlane.xlu0 %1430
        %v1432 = vrcp.pop %v1431
        %v1433 = vmul.f32 %v1431, %v1432
        %v1434 = vsub.f32 1.0, %v1433
        %v1435 = vmul.f32 %v1432, %v1434
        %v1436 = vadd.f32 %v1432, %v1435
        %vm1437 = vweird.f32 %v1431
        %vm1438 = vweird.f32 %v1432
        %vm1439 = vmor %vm1437, %vm1438
        %v1440 = vsel %vm1439, %v1432, %v1436
        %v1441 = vand.u32 2147483647, %v1431
        %vm1442 = vcmp.eq.f32.partialorder %v1441, 8.507059e+37
        %v1443 = vand.u32 %v1431, 2147483648
        %v1444 = vor.u32 1.1754944e-38, %v1443
        %v1445 = vsel %vm1442, %v1444, %v1440
        %v1446 = vmul.f32 %v1428, %v1445
        %1447 = vrot.lane.b32.xlu0 %v896, 112
        %v1448 = vpop.permute.xlu0 %1447
        %v1451 = vsel %vm899, %v1446, 0
        %1453 = vmatpush.msra.mxu0 0.0
        %1454 = vmatpush.msra.mxu0 0.0
        %1455 = vmatpush.msra.mxu0 0.0
        %1456 = vmatpush.msra.mxu0 0.0
        %1457 = vmatpush.msra.mxu0 0.0
        %1458 = vmatpush.msra.mxu0 0.0
        %1459 = vmatpush.msra.mxu0 0.0
        %1460 = vmatpush.msra.mxu0 0.0
        %1461 = vmatpush.msra.mxu0 0.0
        %1462 = vmatpush.msra.mxu0 0.0
        %1463 = vmatpush.msra.mxu0 0.0
        %1464 = vmatpush.msra.mxu0 0.0
        %1465 = vmatpush.msra.mxu0 0.0
        %1466 = vmatpush.msra.mxu0 0.0
        %1467 = vmatpush.msra.mxu0 0.0
        %1468 = vmatpush.msra.mxu0 %v1448
        %1469 = vmatmul.f32.gmra.mxu0 %v1451
        %v1470 = vpop.f32.mrf.mxu0
        %v1471 = vadd.f32 0.0, %v1470
        %1472 = vdwg.mxu0
        %1473 = vrot.lane.b32.xlu0 %v842, 104
        %v1474 = vpop.permute.xlu0 %1473
        %1475 = vrot.lane.b32.xlu0 %v869, 104
        %v1476 = vpop.permute.xlu0 %1475
        %v1477 = vsel %vm899, %v1474, 0
        %v1479 = vsel %vm899, %v1476, 0
        %1481 = vmatpush.xpose.msra.mxu0 0.0
        %1482 = vmatpush.xpose.msra.mxu0 0.0
        %1483 = vmatpush.xpose.msra.mxu0 0.0
        %1484 = vmatpush.xpose.msra.mxu0 0.0
        %1485 = vmatpush.xpose.msra.mxu0 0.0
        %1486 = vmatpush.xpose.msra.mxu0 0.0
        %1487 = vmatpush.xpose.msra.mxu0 0.0
        %1488 = vmatpush.xpose.msra.mxu0 0.0
        %1489 = vmatpush.xpose.msra.mxu0 0.0
        %1490 = vmatpush.xpose.msra.mxu0 0.0
        %1491 = vmatpush.xpose.msra.mxu0 0.0
        %1492 = vmatpush.xpose.msra.mxu0 0.0
        %1493 = vmatpush.xpose.msra.mxu0 0.0
        %1494 = vmatpush.xpose.msra.mxu0 0.0
        %1495 = vmatpush.xpose.msra.mxu0 0.0
        %1496 = vmatpush.xpose.msra.mxu0 %v1479
        %1497 = vmatmul.f32.gmra.mxu0 %v1477
        %v1498 = vpop.f32.mrf.mxu0
        %v1499 = vadd.f32 0.0, %v1498
        %1500 = vdwg.mxu0
        %v1501 = vsel %vm1262, -1e+20, %v1499
        %v1502 = vmul.f32 %v1501, 0.17677669
        %v1503 = vsel %vm899, %v1502, -inf
        %1504 = vmax.xlane.f32.xlu0 %v1503
        %v1505 = vpop.xlane.xlu0 %1504
        %v1506 = vsub.f32 %v1502, %v1505
        %v1507 = vmul.f32 %v1506, 1.442695
        %v1508 = vpow.pop %v1507
        %v1509 = vsel %vm899, %v1508, 0.0
        %1510 = vadd.xlane.f32.xlu0 %v1509
        %v1511 = vpop.xlane.xlu0 %1510
        %v1512 = vrcp.pop %v1511
        %v1513 = vmul.f32 %v1511, %v1512
        %v1514 = vsub.f32 1.0, %v1513
        %v1515 = vmul.f32 %v1512, %v1514
        %v1516 = vadd.f32 %v1512, %v1515
        %vm1517 = vweird.f32 %v1511
        %vm1518 = vweird.f32 %v1512
        %vm1519 = vmor %vm1517, %vm1518
        %v1520 = vsel %vm1519, %v1512, %v1516
        %v1521 = vand.u32 2147483647, %v1511
        %vm1522 = vcmp.eq.f32.partialorder %v1521, 8.507059e+37
        %v1523 = vand.u32 %v1511, 2147483648
        %v1524 = vor.u32 1.1754944e-38, %v1523
        %v1525 = vsel %vm1522, %v1524, %v1520
        %v1526 = vmul.f32 %v1508, %v1525
        %1527 = vrot.lane.b32.xlu0 %v896, 104
        %v1528 = vpop.permute.xlu0 %1527
        %v1531 = vsel %vm899, %v1526, 0
        %1533 = vmatpush.msra.mxu0 0.0
        %1534 = vmatpush.msra.mxu0 0.0
        %1535 = vmatpush.msra.mxu0 0.0
        %1536 = vmatpush.msra.mxu0 0.0
        %1537 = vmatpush.msra.mxu0 0.0
        %1538 = vmatpush.msra.mxu0 0.0
        %1539 = vmatpush.msra.mxu0 0.0
        %1540 = vmatpush.msra.mxu0 0.0
        %1541 = vmatpush.msra.mxu0 0.0
        %1542 = vmatpush.msra.mxu0 0.0
        %1543 = vmatpush.msra.mxu0 0.0
        %1544 = vmatpush.msra.mxu0 0.0
        %1545 = vmatpush.msra.mxu0 0.0
        %1546 = vmatpush.msra.mxu0 0.0
        %1547 = vmatpush.msra.mxu0 0.0
        %1548 = vmatpush.msra.mxu0 %v1528
        %1549 = vmatmul.f32.gmra.mxu0 %v1531
        %v1550 = vpop.f32.mrf.mxu0
        %v1551 = vadd.f32 0.0, %v1550
        %1552 = vdwg.mxu0
        %1554 = vrot.lane.b32.xlu0 %v1391, 8
        %v1555 = vpop.permute.xlu0 %1554
        %1558 = vrot.lane.b32.xlu0 %v1471, 16
        %v1559 = vpop.permute.xlu0 %1558
        %1562 = vrot.lane.b32.xlu0 %v1551, 24
        %v1563 = vpop.permute.xlu0 %1562
        %v1565 = vsel %vm899, %v1310, %v1555
        %v1566 = vsel %vm1230, %v1565, %v1559
        %v1567 = vsel %vm1232, %v1566, %v1563
        %v1568 = vld [vmem:[%s769] sm:$0xff]
        %v1569 = vld [vmem:[%s769 + $0x8] sm:$0xff]
        %v1570 = vld [vmem:[%s769 + $0x10] sm:$0xff]
        %v1571 = vld [vmem:[%s769 + $0x18] sm:$0xff]
        %v1572 = vld [vmem:[%s772] sm:$0x1]
        %v1574 = vperm.slane %v1572, 0
        %v1577 = vsel %vm814, %v1233, 0
        %v1580 = vsel %vm814, %v1567, 0
        %1582 = vmatpush.msra.mxu0 0.0
        %1583 = vmatpush.msra.mxu0 0.0
        %1584 = vmatpush.msra.mxu0 0.0
        %1585 = vmatpush.msra.mxu0 0.0
        %1586 = vmatpush.msra.mxu0 0.0
        %1587 = vmatpush.msra.mxu0 0.0
        %1588 = vmatpush.msra.mxu0 0.0
        %1589 = vmatpush.msra.mxu0 0.0
        %1590 = vmatpush.msra.mxu0 0.0
        %1591 = vmatpush.msra.mxu0 0.0
        %1592 = vmatpush.msra.mxu0 0.0
        %1593 = vmatpush.msra.mxu0 0.0
        %1594 = vmatpush.msra.mxu0 %v1571
        %1595 = vmatpush.msra.mxu0 %v1570
        %1596 = vmatpush.msra.mxu0 %v1569
        %1597 = vmatpush.msra.mxu0 %v1568
        %1598 = vmatmul.f32.gmra.mxu0 %v1577
        %v1599 = vpop.f32.mrf.mxu0
        %v1600 = vadd.f32 %v1574, %v1599
        %1601 = vmatmul.f32.gmra.mxu0 %v1580
        %v1602 = vpop.f32.mrf.mxu0
        %v1603 = vadd.f32 %v1574, %v1602
        %1604 = vdwg.mxu0
        %v1605 = vadd.f32 %v1600, %v808
        %v1606 = vadd.f32 %v1603, %v809
        %v1607 = vsel %vm814, %v1605, 0.0
        %1608 = vadd.xlane.f32.xlu0 %v1607
        %v1609 = vpop.xlane.xlu0 %1608
        %v1610 = vsel %vm814, %v1606, 0.0
        %1611 = vadd.xlane.f32.xlu0 %v1610
        %v1612 = vpop.xlane.xlu0 %1611
        %v1613 = vrcp.pop 32.0
        %v1614 = vmul.f32 32.0, %v1613
        %v1615 = vsub.f32 1.0, %v1614
        %v1616 = vmul.f32 %v1613, %v1615
        %v1617 = vadd.f32 %v1613, %v1616
        %vm1618 = vweird.f32 %v1613
        %v1619 = vsel %vm1618, %v1613, %v1617
        %v1620 = vmul.f32 %v1609, %v1619
        %v1621 = vmul.f32 %v1612, %v1619
        %v1622 = vsub.f32 %v1605, %v1620
        %v1623 = vsub.f32 %v1606, %v1621
        %v1624 = vmul.f32 %v1622, %v1622
        %v1625 = vmul.f32 %v1623, %v1623
        %v1626 = vsel %vm814, %v1624, 0.0
        %1627 = vadd.xlane.f32.xlu0 %v1626
        %v1628 = vpop.xlane.xlu0 %1627
        %v1629 = vsel %vm814, %v1625, 0.0
        %1630 = vadd.xlane.f32.xlu0 %v1629
        %v1631 = vpop.xlane.xlu0 %1630
        %v1632 = vmul.f32 %v1628, %v1619
        %v1633 = vmul.f32 %v1631, %v1619
        %v1634 = vadd.f32 %v1632, 1e-05
        %v1635 = vadd.f32 %v1633, 1e-05
        %v1636 = vrsqrt.pop %v1634
        %v1637 = vmul.f32 %v1636, %v1634
        %v1638 = vmul.f32 %v1637, %v1636
        %v1639 = vmul.f32 0.5, %v1638
        %v1640 = vsub.f32 1.5, %v1639
        %v1641 = vmul.f32 %v1636, %v1640
        %vm1642 = vweird.f32 %v1634
        %vm1643 = vweird.f32 %v1636
        %vm1644 = vmor %vm1642, %vm1643
        %v1645 = vsel %vm1644, %v1636, %v1641
        %v1646 = vrsqrt.pop %v1635
        %v1647 = vmul.f32 %v1646, %v1635
        %v1648 = vmul.f32 %v1647, %v1646
        %v1649 = vmul.f32 0.5, %v1648
        %v1650 = vsub.f32 1.5, %v1649
        %v1651 = vmul.f32 %v1646, %v1650
        %vm1652 = vweird.f32 %v1635
        %vm1653 = vweird.f32 %v1646
        %vm1654 = vmor %vm1652, %vm1653
        %v1655 = vsel %vm1654, %v1646, %v1651
        %v1656 = vmul.f32 %v1622, %v1645
        %v1657 = vmul.f32 %v1623, %v1655
        %v1658 = vld [vmem:[%s775] sm:$0x1]
        %v1660 = vperm.slane %v1658, 0
        %v1662 = vmul.f32 %v1656, %v1660
        %v1663 = vmul.f32 %v1657, %v1660
        %v1664 = vld [vmem:[%s778] sm:$0x1]
        %v1666 = vperm.slane %v1664, 0
        %v1668 = vadd.f32 %v1662, %v1666
        %v1669 = vadd.f32 %v1663, %v1666
        %v1670 = vld [vmem:[%s783] sm:$0xff]
        %v1671 = vld [vmem:[%s783 + $0x8] sm:$0xff]
        %v1672 = vld [vmem:[%s783 + $0x10] sm:$0xff]
        %v1673 = vld [vmem:[%s783 + $0x18] sm:$0xff]
        %v1674 = vld [vmem:[%s648] sm:$0x1]
        %v1676 = vperm.slane %v1674, 0
        %v1679 = vsel %vm814, %v1668, 0
        %v1682 = vsel %vm814, %v1669, 0
        %1684 = vmatpush.msra.mxu0 0.0
        %1685 = vmatpush.msra.mxu0 0.0
        %1686 = vmatpush.msra.mxu0 0.0
        %1687 = vmatpush.msra.mxu0 0.0
        %1688 = vmatpush.msra.mxu0 0.0
        %1689 = vmatpush.msra.mxu0 0.0
        %1690 = vmatpush.msra.mxu0 0.0
        %1691 = vmatpush.msra.mxu0 0.0
        %1692 = vmatpush.msra.mxu0 0.0
        %1693 = vmatpush.msra.mxu0 0.0
        %1694 = vmatpush.msra.mxu0 0.0
        %1695 = vmatpush.msra.mxu0 0.0
        %1696 = vmatpush.msra.mxu0 %v1673
        %1697 = vmatpush.msra.mxu0 %v1672
        %1698 = vmatpush.msra.mxu0 %v1671
        %1699 = vmatpush.msra.mxu0 %v1670
        %1700 = vmatmul.f32.gmra.mxu0 %v1679
        %v1701 = vpop.f32.mrf.mxu0
        %v1702 = vadd.f32 %v1676, %v1701
        %1703 = vmatmul.f32.gmra.mxu0 %v1682
        %v1704 = vpop.f32.mrf.mxu0
        %v1705 = vadd.f32 %v1676, %v1704
        %1706 = vdwg.mxu0
        %v1707 = vmax.f32 %v1702, 0.0
        %v1708 = vmax.f32 %v1705, 0.0
        %v1709 = vld [vmem:[%s788] sm:$0xff]
        %v1710 = vld [vmem:[%s788 + $0x8] sm:$0xff]
        %v1711 = vld [vmem:[%s788 + $0x10] sm:$0xff]
        %v1712 = vld [vmem:[%s788 + $0x18] sm:$0xff]
        %v1713 = vld [vmem:[%s788 + $0x20] sm:$0xff]
        %v1714 = vld [vmem:[%s788 + $0x28] sm:$0xff]
        %v1715 = vld [vmem:[%s788 + $0x30] sm:$0xff]
        %v1716 = vld [vmem:[%s788 + $0x38] sm:$0xff]
        %v1717 = vld [vmem:[%s788 + $0x40] sm:$0xff]
        %v1718 = vld [vmem:[%s788 + $0x48] sm:$0xff]
        %v1719 = vld [vmem:[%s788 + $0x50] sm:$0xff]
        %v1720 = vld [vmem:[%s788 + $0x58] sm:$0xff]
        %v1721 = vld [vmem:[%s788 + $0x60] sm:$0xff]
        %v1722 = vld [vmem:[%s788 + $0x68] sm:$0xff]
        %v1723 = vld [vmem:[%s788 + $0x70] sm:$0xff]
        %v1724 = vld [vmem:[%s788 + $0x78] sm:$0xff]
        %v1725 = vld [vmem:[%s791] sm:$0x1]
        %v1727 = vperm.slane %v1725, 0
        %1729 = vmatpush.msra.mxu0 %v1724
        %1730 = vmatpush.msra.mxu0 %v1723
        %1731 = vmatpush.msra.mxu0 %v1722
        %1732 = vmatpush.msra.mxu0 %v1721
        %1733 = vmatpush.msra.mxu0 %v1720
        %1734 = vmatpush.msra.mxu0 %v1719
        %1735 = vmatpush.msra.mxu0 %v1718
        %1736 = vmatpush.msra.mxu0 %v1717
        %1737 = vmatpush.msra.mxu0 %v1716
        %1738 = vmatpush.msra.mxu0 %v1715
        %1739 = vmatpush.msra.mxu0 %v1714
        %1740 = vmatpush.msra.mxu0 %v1713
        %1741 = vmatpush.msra.mxu0 %v1712
        %1742 = vmatpush.msra.mxu0 %v1711
        %1743 = vmatpush.msra.mxu0 %v1710
        %1744 = vmatpush.msra.mxu0 %v1709
        %1745 = vmatmul.f32.gmra.mxu0 %v1707
        %v1746 = vpop.f32.mrf.mxu0
        %v1747 = vadd.f32 %v1727, %v1746
        %1748 = vmatmul.f32.gmra.mxu0 %v1708
        %v1749 = vpop.f32.mrf.mxu0
        %v1750 = vadd.f32 %v1727, %v1749
        %1751 = vdwg.mxu0
        %v1752 = vadd.f32 %v1747, %v1668
        %v1753 = vadd.f32 %v1750, %v1669
        %v1754 = vsel %vm814, %v1752, 0.0
        %1755 = vadd.xlane.f32.xlu0 %v1754
        %v1756 = vpop.xlane.xlu0 %1755
        %v1757 = vsel %vm814, %v1753, 0.0
        %1758 = vadd.xlane.f32.xlu0 %v1757
        %v1759 = vpop.xlane.xlu0 %1758
        %v1760 = vmul.f32 %v1756, %v1619
        %v1761 = vmul.f32 %v1759, %v1619
        %v1762 = vsub.f32 %v1752, %v1760
        %v1763 = vsub.f32 %v1753, %v1761
        %v1764 = vmul.f32 %v1762, %v1762
        %v1765 = vmul.f32 %v1763, %v1763
        %v1766 = vsel %vm814, %v1764, 0.0
        %1767 = vadd.xlane.f32.xlu0 %v1766
        %v1768 = vpop.xlane.xlu0 %1767
        %v1769 = vsel %vm814, %v1765, 0.0
        %1770 = vadd.xlane.f32.xlu0 %v1769
        %v1771 = vpop.xlane.xlu0 %1770
        %v1772 = vmul.f32 %v1768, %v1619
        %v1773 = vmul.f32 %v1771, %v1619
        %v1774 = vadd.f32 %v1772, 1e-05
        %v1775 = vadd.f32 %v1773, 1e-05
        %v1776 = vrsqrt.pop %v1774
        %v1777 = vmul.f32 %v1776, %v1774
        %v1778 = vmul.f32 %v1777, %v1776
        %v1779 = vmul.f32 0.5, %v1778
        %v1780 = vsub.f32 1.5, %v1779
        %v1781 = vmul.f32 %v1776, %v1780
        %vm1782 = vweird.f32 %v1774
        %vm1783 = vweird.f32 %v1776
        %vm1784 = vmor %vm1782, %vm1783
        %v1785 = vsel %vm1784, %v1776, %v1781
        %v1786 = vrsqrt.pop %v1775
        %v1787 = vmul.f32 %v1786, %v1775
        %v1788 = vmul.f32 %v1787, %v1786
        %v1789 = vmul.f32 0.5, %v1788
        %v1790 = vsub.f32 1.5, %v1789
        %v1791 = vmul.f32 %v1786, %v1790
        %vm1792 = vweird.f32 %v1775
        %vm1793 = vweird.f32 %v1786
        %vm1794 = vmor %vm1792, %vm1793
        %v1795 = vsel %vm1794, %v1786, %v1791
        %v1796 = vmul.f32 %v1762, %v1785
        %v1797 = vmul.f32 %v1763, %v1795
        %v1798 = vld [vmem:[%s794] sm:$0x1]
        %v1800 = vperm.slane %v1798, 0
        %v1802 = vmul.f32 %v1796, %v1800
        %v1803 = vmul.f32 %v1797, %v1800
        %v1804 = vld [vmem:[%s657] sm:$0x1]
        %v1806 = vperm.slane %v1804, 0
        %v1808 = vadd.f32 %v1802, %v1806
        %v1809 = vadd.f32 %v1803, %v1806
        %1810 = vst.msk [vmem:[#allocation11] sm:$0xff] %vm814, %v1808
        %1811 = vst.msk [vmem:[#allocation11 + $0x8] sm:$0xff] %vm814, %v1809
        // Predicated region
        $region109: #{tpu_custom_call.1} parent=83 // pred_check
          %p1812 = pneg %p447
        $region110: #{tpu_custom_call.1} parent=83 // pred_check_branch
          %1814 = sbr.rel (%p1812) target = $region112
        $region111: #{tpu_custom_call.1} parent=83 // pred_region
          %1816 = vsyncadd [#allocation4], 0
          %s1817 = sshll.u32 [#allocation11], 4
          %s1818 = int_to_ptr.vmem [resolvable:$true] %s1817
          %s1819 = sshll.u32 %s16, 4
          %s1820 = int_to_ptr.hbm [resolvable:$true] %s1819
          %1825 = dma.vmem_to_hbm [thread:$0]  %s1818, 256, %s1820, [#allocation4], 128, 128, 8
        $region112: #{tpu_custom_call.1} parent=83 // pred_fallthru
          _
        // Predicated region
        $region113: #{tpu_custom_call.1} parent=83 // pred_check
          %p1826 = pneg %p447
        $region114: #{tpu_custom_call.1} parent=83 // pred_check_branch
          %1828 = sbr.rel (%p1826) target = $region116
        $region115: #{tpu_custom_call.1} parent=83 // pred_region
          %1830 = dma.done [#allocation4], 256
        $region116: #{tpu_custom_call.1} parent=83 // pred_fallthru
          _
      $region84: #{tpu_custom_call.1} parent=5 // pred_fallthru
        _
      %p1831 = scmp.le.s32.totalorder 2, %s28
      // Predicated region
      $region117: #{tpu_custom_call.1} parent=5 // pred_check
        %p1832 = pneg %p1831
      $region118: #{tpu_custom_call.1} parent=5 // pred_check_branch
        %1834 = sbr.rel (%p1832) target = $region120
      $region119: #{tpu_custom_call.1} parent=5 // pred_region
        %s1835 = ssub.s32 %s28, 2
      $region120: #{tpu_custom_call.1} parent=5 // pred_fallthru
        _
    $region6: #{tpu_custom_call.1} parent=1 // loop_footer
      %s32 = sadd.s32 1, %s28
    $region7: #{tpu_custom_call.1} parent=1 // loop_footer_branch
      %27 = sbr.rel target = $region3
    $region8: #{tpu_custom_call.1} parent=1 // loop_exit
      _
    %1836 = vsyncpa [#allocation3], 1
    %s1837 = scalar_lea.sflag [#allocation3], 1
    %1838 = vsyncpa %s1837, 1
    %1839 = vsyncpa [#allocation6], 1
    %1840 = vsyncpa [#allocation9], 1
    %s1841 = scalar_lea.sflag [#allocation9], 1
    %1842 = vsyncpa %s1841, 1
    %1843 = vsyncpa [#allocation4], 1
    %s1844 = scalar_lea.sflag [#allocation4], 1
    %1845 = vsyncpa %s1844, 1

</llo_original>
